<compile_context>
chip_gen: v5e
topology: v5e:2x2
jax: 0.10.0
libtpu: 0.0.40
codegen_flags: <defaults>
</compile_context>

<pallas_src>
import functools

import jax
import jax.numpy as jnp
from jax.experimental import pallas as pl
from jax.experimental.pallas import tpu as pltpu


def _rup(x, m):
    return ((x + m - 1) // m) * m


def _sublane(itemsize):
    # Sublane tile grows as the dtype shrinks (f32: 8, bf16: 16, int8: 32).
    return max(8, 8 * (4 // max(int(itemsize), 1)))


def _vmem_capacity_bytes():
    try:
        return int(pltpu.get_tpu_info().vmem_capacity_bytes)
    except Exception:
        return 64 << 20  # conservative (v7x-sized) default


def _contract_kernel(x_ref, o_ref, t_ref, *, gain, W, H2, W2, lane_dense):
    """One (batch, channel-tile) step of Contract.

    x_ref : (1, cb, H2, gain*W)                 input block (lane dim = gain*W)
    o_ref : (1, s*s, cb, H2*W2)  or  (1, s*s, cb, H2, W2)   output block
    t_ref : (cb, gain*W, H2)                    VMEM scratch (transposed tile)
    """
    s = gain
    cb = x_ref.shape[1]
    # One XLU pass: put the interleaved (s1, w2, s2) axis on sublanes so the
    # phase selection becomes a sublane-strided VMEM read (lane stride == 1).
    t_ref[...] = jnp.swapaxes(x_ref[0], -1, -2)                    # (cb, s*W, H2)
    for s1 in range(s):                                            # static unroll
        for s2 in range(s):                                        # static unroll
            # lanes u = s1*W + s*w2 + s2  for w2 in [0, W2)
            sel = t_ref[:, pl.ds(s1 * W + s2, W2, stride=s), :]    # (cb, W2, H2)
            phase = jnp.swapaxes(sel, -1, -2)                      # (cb, H2, W2)
            if lane_dense:
                # One relayout per phase; store target is a lane-dense slab.
                o_ref[0, s1 * s + s2, :, :] = phase.reshape(cb, H2 * W2)
            else:
                o_ref[0, s1 * s + s2, :, :, :] = phase


def _step_footprint(cb, *, s, H2, W, W2, itemsize, lane_dense):
    """Per-grid-step VMEM bytes incl. double-buffering and (8,128) padding."""
    sub = _sublane(itemsize)
    inp = cb * _rup(H2, sub) * _rup(s * W, 128) * itemsize
    if lane_dense:
        out = s * s * _rup(cb, sub) * _rup(H2 * W2, 128) * itemsize
    else:
        out = s * s * cb * _rup(H2, sub) * _rup(W2, 128) * itemsize
    scr = cb * _rup(s * W, sub) * _rup(H2, 128) * itemsize
    # 2x in + 2x out (double-buffered) + scratch + relayout temporaries.
    return 2 * inp + 2 * out + scr + out // (s * s) + (1 << 20)


def _choose_channel_tile(N, C, *, s, H2, W, W2, itemsize, lane_dense, budget):
    sub = _sublane(itemsize)
    divisors = [d for d in range(C, 0, -1) if C % d == 0]
    if lane_dense:
        # cb becomes the second-minor dim of the output block: keep it either
        # the full C or a multiple of the sublane tile ((8,128) rule).
        divisors = [d for d in divisors if d == C or d % sub == 0] or [C]

    def fp(d):
        return _step_footprint(d, s=s, H2=H2, W=W, W2=W2,
                               itemsize=itemsize, lane_dense=lane_dense)

    fitting = [d for d in divisors if fp(d) <= budget]
    if not fitting:
        cb = divisors[-1]          # smallest legal tile; caller raises the limit
        return cb, fp(cb)
    cb = fitting[0]                # biggest tile that fits: fewest, largest DMAs
    # Megacore / pipelining: prefer >= 4 grid steps as long as each step still
    # moves >= ~1 MiB of real HBM traffic (stays near the bandwidth roofline).
    plane = H2 * s * W * itemsize  # real input bytes per channel
    for d in fitting:
        if N * (C // d) >= 4 and d * plane >= (1 << 20):
            cb = d
            break
    return cb, fp(cb)


@functools.partial(jax.jit, static_argnames=("gain", "lane_dense"))
def _contract_impl(x, gain, lane_dense):
    N, C, H, W = x.shape
    s = int(gain)
    H2, W2 = H // s, W // s
    itemsize = jnp.dtype(x.dtype).itemsize

    # Generation-aware VMEM budgeting (v5e/v6e: 128 MiB physical, v7x: 64 MiB).
    vmem_cap = _vmem_capacity_bytes()
    vmem_limit = min(int(0.75 * vmem_cap), vmem_cap - (8 << 20))
    budget = vmem_limit - (4 << 20)

    cb, footprint = _choose_channel_tile(
        N, C, s=s, H2=H2, W=W, W2=W2, itemsize=itemsize,
        lane_dense=lane_dense, budget=budget)
    num_ct = C // cb
    # If even the smallest legal tile overshoots, raise the limit (clamped to
    # physical VMEM) instead of failing outright.
    vmem_limit = int(min(vmem_cap - (4 << 20),
                         max(vmem_limit, footprint + (4 << 20))))

    # Free, layout-only reshape: x_r[n, c, h2, s1*W + w] == x[n, c, h2*s + s1, w]
    x_r = x.reshape(N, C, H2, s * W)

    kernel = functools.partial(_contract_kernel, gain=s, W=W, H2=H2, W2=W2,
                               lane_dense=lane_dense)

    if lane_dense:
        out_shape = jax.ShapeDtypeStruct((N, s * s, C, H2 * W2), x.dtype)
        out_spec = pl.BlockSpec((1, s * s, cb, H2 * W2),
                                lambda n, ct: (n, 0, ct, 0))
    else:
        out_shape = jax.ShapeDtypeStruct((N, s * s, C, H2, W2), x.dtype)
        out_spec = pl.BlockSpec((1, s * s, cb, H2, W2),
                                lambda n, ct: (n, 0, ct, 0, 0))

    out = pl.pallas_call(
        kernel,
        out_shape=out_shape,
        grid_spec=pltpu.PrefetchScalarGridSpec(
            num_scalar_prefetch=0,
            grid=(N, num_ct),
            in_specs=[pl.BlockSpec((1, cb, H2, s * W),
                                   lambda n, ct: (n, ct, 0, 0))],
            out_specs=out_spec,
            scratch_shapes=[pltpu.VMEM((cb, s * W, H2), x.dtype)],
        ),
        compiler_params=pltpu.CompilerParams(
            dimension_semantics=("parallel", "parallel"),
            vmem_limit_bytes=vmem_limit,
        ),
        cost_estimate=pl.CostEstimate(
            flops=0,
            transcendentals=0,
            bytes_accessed=2 * N * C * H * W * itemsize,
        ),
    )(x_r)

    # Free reshape back to the PyTorch layout: (n, p, c, ...) -> (n, p*C + c, h2, w2)
    return out.reshape(N, C * s * s, H2, W2)


_VARIANT_CACHE = {}


def contract(x, gain: int = 2):
    s = int(gain)
    if s == 1:
        return x
    N, C, H, W = x.shape
    if H % s or W % s:
        raise ValueError("H and W must be divisible by gain")
    key = (tuple(x.shape), jnp.dtype(x.dtype).name, s)
    lane_dense = _VARIANT_CACHE.get(key)
    if lane_dense is not None:
        return _contract_impl(x, gain=s, lane_dense=lane_dense)
    # Prefer the lane-dense store layout (biggest measured store-path lever on
    # TPU); fall back to the proven narrow-store variant if the per-phase
    # relayout does not lower on this jax/libtpu version.
    try:
        out = jax.block_until_ready(_contract_impl(x, gain=s, lane_dense=True))
        _VARIANT_CACHE[key] = True
        return out
    except Exception:
        _VARIANT_CACHE[key] = False
        return _contract_impl(x, gain=s, lane_dense=False)


class ContractPallas:
    """JAX/Pallas equivalent of the PyTorch Contract module."""

    def __init__(self, gain=2):
        self.gain = int(gain)

    def __call__(self, x):
        return contract(x, gain=self.gain)


if __name__ == "__main__":
    key = jax.random.PRNGKey(0)
    x = jax.random.normal(key, (2, 4, 16, 16), dtype=jnp.float32)

    module = ContractPallas(gain=2)
    out = jax.block_until_ready(module(x))

    # Pure-JAX reference mirroring the torch view/permute/view exactly.
    N, C, H, W = x.shape
    s = 2
    ref = x.reshape(N, C, H // s, s, W // s, s)
    ref = jnp.transpose(ref, (0, 3, 5, 1, 2, 4))
    ref = ref.reshape(N, C * s * s, H // s, W // s)

    assert out.shape == ref.shape == (2, 16, 8, 8)
    assert bool(jnp.array_equal(out, ref))
    print("KERNEL_OK")
</pallas_src>

<mosaic_0001>
module attributes {stable_mosaic.version = 11 : i64} {
  func.func @_contract_kernel(%arg0: i32, %arg1: i32, %arg2: memref<1x4x8x32xf32, #tpu.memory_space<vmem>>, %arg3: memref<1x4x4x64xf32, #tpu.memory_space<vmem>>, %arg4: memref<4x32x8xf32, #tpu.memory_space<vmem>>) attributes {dimension_semantics = [#tpu.dimension_semantics<parallel>, #tpu.dimension_semantics<parallel>], iteration_bounds = array<i64: 2, 1>, scalar_prefetch = 0 : i64, scratch_operands = 1 : i64, tpu.core_type = #tpu.core_type<tc>, window_params = [{transform_indices = @transform_0, window_bounds = array<i64: 1, 4, 8, 32>}, {transform_indices = @transform_1, window_bounds = array<i64: 1, 4, 4, 64>}]} {
    %c0 = arith.constant 0 : index
    %c0_0 = arith.constant 0 : index
    %c0_1 = arith.constant 0 : index
    %c0_2 = arith.constant 0 : index
    %0 = vector.load %arg2[%c0, %c0_0, %c0_1, %c0_2] : memref<1x4x8x32xf32, #tpu.memory_space<vmem>>, vector<1x4x8x32xf32>
    %1 = vector.shape_cast %0 : vector<1x4x8x32xf32> to vector<4x8x32xf32>
    %2 = tpu.transpose %1, [0, 2, 1] : vector<4x8x32xf32> -> vector<4x32x8xf32>
    %c0_3 = arith.constant 0 : index
    %c0_4 = arith.constant 0 : index
    %c0_5 = arith.constant 0 : index
    %3 = vector.load %arg4[%c0_3, %c0_4, %c0_5] : memref<4x32x8xf32, #tpu.memory_space<vmem>>, vector<4x32x8xf32>
    tpu.vector_store %arg4[%c0_3, %c0_4, %c0_5], %2 {strides = array<i32>} : memref<4x32x8xf32, #tpu.memory_space<vmem>>, vector<4x32x8xf32>,
    %c0_6 = arith.constant 0 : index
    %c0_7 = arith.constant 0 : index
    %c0_8 = arith.constant 0 : index
    %4 = tpu.strided_load %arg4[%c0_6, %c0_7, %c0_8] {strides = array<i32: 1, 2, 1>} : memref<4x32x8xf32, #tpu.memory_space<vmem>>, vector<4x8x8xf32>
    %5 = tpu.transpose %4, [0, 2, 1] : vector<4x8x8xf32> -> vector<4x8x8xf32>
    %6 = vector.shape_cast %5 : vector<4x8x8xf32> to vector<4x64xf32>
    %c0_9 = arith.constant 0 : index
    %c0_10 = arith.constant 0 : index
    %c0_11 = arith.constant 0 : index
    %c0_12 = arith.constant 0 : index
    %7 = vector.load %arg3[%c0_9, %c0_10, %c0_11, %c0_12] : memref<1x4x4x64xf32, #tpu.memory_space<vmem>>, vector<1x1x4x64xf32>
    %8 = vector.shape_cast %7 : vector<1x1x4x64xf32> to vector<4x64xf32>
    %9 = vector.shape_cast %6 : vector<4x64xf32> to vector<1x1x4x64xf32>
    tpu.vector_store %arg3[%c0_9, %c0_10, %c0_11, %c0_12], %9 {strides = array<i32>} : memref<1x4x4x64xf32, #tpu.memory_space<vmem>>, vector<1x1x4x64xf32>,
    %c0_13 = arith.constant 0 : index
    %c1 = arith.constant 1 : index
    %c0_14 = arith.constant 0 : index
    %10 = tpu.strided_load %arg4[%c0_13, %c1, %c0_14] {strides = array<i32: 1, 2, 1>} : memref<4x32x8xf32, #tpu.memory_space<vmem>>, vector<4x8x8xf32>
    %11 = tpu.transpose %10, [0, 2, 1] : vector<4x8x8xf32> -> vector<4x8x8xf32>
    %12 = vector.shape_cast %11 : vector<4x8x8xf32> to vector<4x64xf32>
    %c0_15 = arith.constant 0 : index
    %c1_16 = arith.constant 1 : index
    %c0_17 = arith.constant 0 : index
    %c0_18 = arith.constant 0 : index
    %13 = vector.load %arg3[%c0_15, %c1_16, %c0_17, %c0_18] : memref<1x4x4x64xf32, #tpu.memory_space<vmem>>, vector<1x1x4x64xf32>
    %14 = vector.shape_cast %13 : vector<1x1x4x64xf32> to vector<4x64xf32>
    %15 = vector.shape_cast %12 : vector<4x64xf32> to vector<1x1x4x64xf32>
    tpu.vector_store %arg3[%c0_15, %c1_16, %c0_17, %c0_18], %15 {strides = array<i32>} : memref<1x4x4x64xf32, #tpu.memory_space<vmem>>, vector<1x1x4x64xf32>,
    %c0_19 = arith.constant 0 : index
    %c16 = arith.constant 16 : index
    %c0_20 = arith.constant 0 : index
    %16 = tpu.strided_load %arg4[%c0_19, %c16, %c0_20] {strides = array<i32: 1, 2, 1>} : memref<4x32x8xf32, #tpu.memory_space<vmem>>, vector<4x8x8xf32>
    %17 = tpu.transpose %16, [0, 2, 1] : vector<4x8x8xf32> -> vector<4x8x8xf32>
    %18 = vector.shape_cast %17 : vector<4x8x8xf32> to vector<4x64xf32>
    %c0_21 = arith.constant 0 : index
    %c2 = arith.constant 2 : index
    %c0_22 = arith.constant 0 : index
    %c0_23 = arith.constant 0 : index
    %19 = vector.load %arg3[%c0_21, %c2, %c0_22, %c0_23] : memref<1x4x4x64xf32, #tpu.memory_space<vmem>>, vector<1x1x4x64xf32>
    %20 = vector.shape_cast %19 : vector<1x1x4x64xf32> to vector<4x64xf32>
    %21 = vector.shape_cast %18 : vector<4x64xf32> to vector<1x1x4x64xf32>
    tpu.vector_store %arg3[%c0_21, %c2, %c0_22, %c0_23], %21 {strides = array<i32>} : memref<1x4x4x64xf32, #tpu.memory_space<vmem>>, vector<1x1x4x64xf32>,
    %c0_24 = arith.constant 0 : index
    %c17 = arith.constant 17 : index
    %c0_25 = arith.constant 0 : index
    %22 = tpu.strided_load %arg4[%c0_24, %c17, %c0_25] {strides = array<i32: 1, 2, 1>} : memref<4x32x8xf32, #tpu.memory_space<vmem>>, vector<4x8x8xf32>
    %23 = tpu.transpose %22, [0, 2, 1] : vector<4x8x8xf32> -> vector<4x8x8xf32>
    %24 = vector.shape_cast %23 : vector<4x8x8xf32> to vector<4x64xf32>
    %c0_26 = arith.constant 0 : index
    %c3 = arith.constant 3 : index
    %c0_27 = arith.constant 0 : index
    %c0_28 = arith.constant 0 : index
    %25 = vector.load %arg3[%c0_26, %c3, %c0_27, %c0_28] : memref<1x4x4x64xf32, #tpu.memory_space<vmem>>, vector<1x1x4x64xf32>
    %26 = vector.shape_cast %25 : vector<1x1x4x64xf32> to vector<4x64xf32>
    %27 = vector.shape_cast %24 : vector<4x64xf32> to vector<1x1x4x64xf32>
    tpu.vector_store %arg3[%c0_26, %c3, %c0_27, %c0_28], %27 {strides = array<i32>} : memref<1x4x4x64xf32, #tpu.memory_space<vmem>>, vector<1x1x4x64xf32>,
    return
  }
  func.func @transform_0(%arg0: i32, %arg1: i32) -> (i32, i32, i32, i32) {
    %c0_i32 = arith.constant 0 : i32
    %c0_i32_0 = arith.constant 0 : i32
    %c0_i32_1 = arith.constant 0 : i32
    return %arg0, %arg1, %c0_i32, %c0_i32_0 : i32, i32, i32, i32
  }
  func.func @transform_1(%arg0: i32, %arg1: i32) -> (i32, i32, i32, i32) {
    %c0_i32 = arith.constant 0 : i32
    %c0_i32_0 = arith.constant 0 : i32
    %c0_i32_1 = arith.constant 0 : i32
    return %arg0, %c0_i32, %arg1, %c0_i32_0 : i32, i32, i32, i32
  }
}

module attributes {stable_mosaic.version = 11 : i64} {
  func.func @_contract_kernel(%arg0: i32, %arg1: i32, %arg2: memref<1x4x8x32xf32, #tpu.memory_space<vmem>>, %arg3: memref<1x4x4x8x8xf32, #tpu.memory_space<vmem>>, %arg4: memref<4x32x8xf32, #tpu.memory_space<vmem>>) attributes {dimension_semantics = [#tpu.dimension_semantics<parallel>, #tpu.dimension_semantics<parallel>], iteration_bounds = array<i64: 2, 1>, scalar_prefetch = 0 : i64, scratch_operands = 1 : i64, tpu.core_type = #tpu.core_type<tc>, window_params = [{transform_indices = @transform_0, window_bounds = array<i64: 1, 4, 8, 32>}, {transform_indices = @transform_1, window_bounds = array<i64: 1, 4, 4, 8, 8>}]} {
    %c0 = arith.constant 0 : index
    %c0_0 = arith.constant 0 : index
    %c0_1 = arith.constant 0 : index
    %c0_2 = arith.constant 0 : index
    %0 = vector.load %arg2[%c0, %c0_0, %c0_1, %c0_2] : memref<1x4x8x32xf32, #tpu.memory_space<vmem>>, vector<1x4x8x32xf32>
    %1 = vector.shape_cast %0 : vector<1x4x8x32xf32> to vector<4x8x32xf32>
    %2 = tpu.transpose %1, [0, 2, 1] : vector<4x8x32xf32> -> vector<4x32x8xf32>
    %c0_3 = arith.constant 0 : index
    %c0_4 = arith.constant 0 : index
    %c0_5 = arith.constant 0 : index
    %3 = vector.load %arg4[%c0_3, %c0_4, %c0_5] : memref<4x32x8xf32, #tpu.memory_space<vmem>>, vector<4x32x8xf32>
    tpu.vector_store %arg4[%c0_3, %c0_4, %c0_5], %2 {strides = array<i32>} : memref<4x32x8xf32, #tpu.memory_space<vmem>>, vector<4x32x8xf32>,
    %c0_6 = arith.constant 0 : index
    %c0_7 = arith.constant 0 : index
    %c0_8 = arith.constant 0 : index
    %4 = tpu.strided_load %arg4[%c0_6, %c0_7, %c0_8] {strides = array<i32: 1, 2, 1>} : memref<4x32x8xf32, #tpu.memory_space<vmem>>, vector<4x8x8xf32>
    %5 = tpu.transpose %4, [0, 2, 1] : vector<4x8x8xf32> -> vector<4x8x8xf32>
    %c0_9 = arith.constant 0 : index
    %c0_10 = arith.constant 0 : index
    %c0_11 = arith.constant 0 : index
    %c0_12 = arith.constant 0 : index
    %c0_13 = arith.constant 0 : index
    %6 = vector.load %arg3[%c0_9, %c0_10, %c0_11, %c0_12, %c0_13] : memref<1x4x4x8x8xf32, #tpu.memory_space<vmem>>, vector<1x1x4x8x8xf32>
    %7 = vector.shape_cast %6 : vector<1x1x4x8x8xf32> to vector<4x8x8xf32>
    %8 = vector.shape_cast %5 : vector<4x8x8xf32> to vector<1x1x4x8x8xf32>
    tpu.vector_store %arg3[%c0_9, %c0_10, %c0_11, %c0_12, %c0_13], %8 {strides = array<i32>} : memref<1x4x4x8x8xf32, #tpu.memory_space<vmem>>, vector<1x1x4x8x8xf32>,
    %c0_14 = arith.constant 0 : index
    %c1 = arith.constant 1 : index
    %c0_15 = arith.constant 0 : index
    %9 = tpu.strided_load %arg4[%c0_14, %c1, %c0_15] {strides = array<i32: 1, 2, 1>} : memref<4x32x8xf32, #tpu.memory_space<vmem>>, vector<4x8x8xf32>
    %10 = tpu.transpose %9, [0, 2, 1] : vector<4x8x8xf32> -> vector<4x8x8xf32>
    %c0_16 = arith.constant 0 : index
    %c1_17 = arith.constant 1 : index
    %c0_18 = arith.constant 0 : index
    %c0_19 = arith.constant 0 : index
    %c0_20 = arith.constant 0 : index
    %11 = vector.load %arg3[%c0_16, %c1_17, %c0_18, %c0_19, %c0_20] : memref<1x4x4x8x8xf32, #tpu.memory_space<vmem>>, vector<1x1x4x8x8xf32>
    %12 = vector.shape_cast %11 : vector<1x1x4x8x8xf32> to vector<4x8x8xf32>
    %13 = vector.shape_cast %10 : vector<4x8x8xf32> to vector<1x1x4x8x8xf32>
    tpu.vector_store %arg3[%c0_16, %c1_17, %c0_18, %c0_19, %c0_20], %13 {strides = array<i32>} : memref<1x4x4x8x8xf32, #tpu.memory_space<vmem>>, vector<1x1x4x8x8xf32>,
    %c0_21 = arith.constant 0 : index
    %c16 = arith.constant 16 : index
    %c0_22 = arith.constant 0 : index
    %14 = tpu.strided_load %arg4[%c0_21, %c16, %c0_22] {strides = array<i32: 1, 2, 1>} : memref<4x32x8xf32, #tpu.memory_space<vmem>>, vector<4x8x8xf32>
    %15 = tpu.transpose %14, [0, 2, 1] : vector<4x8x8xf32> -> vector<4x8x8xf32>
    %c0_23 = arith.constant 0 : index
    %c2 = arith.constant 2 : index
    %c0_24 = arith.constant 0 : index
    %c0_25 = arith.constant 0 : index
    %c0_26 = arith.constant 0 : index
    %16 = vector.load %arg3[%c0_23, %c2, %c0_24, %c0_25, %c0_26] : memref<1x4x4x8x8xf32, #tpu.memory_space<vmem>>, vector<1x1x4x8x8xf32>
    %17 = vector.shape_cast %16 : vector<1x1x4x8x8xf32> to vector<4x8x8xf32>
    %18 = vector.shape_cast %15 : vector<4x8x8xf32> to vector<1x1x4x8x8xf32>
    tpu.vector_store %arg3[%c0_23, %c2, %c0_24, %c0_25, %c0_26], %18 {strides = array<i32>} : memref<1x4x4x8x8xf32, #tpu.memory_space<vmem>>, vector<1x1x4x8x8xf32>,
    %c0_27 = arith.constant 0 : index
    %c17 = arith.constant 17 : index
    %c0_28 = arith.constant 0 : index
    %19 = tpu.strided_load %arg4[%c0_27, %c17, %c0_28] {strides = array<i32: 1, 2, 1>} : memref<4x32x8xf32, #tpu.memory_space<vmem>>, vector<4x8x8xf32>
    %20 = tpu.transpose %19, [0, 2, 1] : vector<4x8x8xf32> -> vector<4x8x8xf32>
    %c0_29 = arith.constant 0 : index
    %c3 = arith.constant 3 : index
    %c0_30 = arith.constant 0 : index
    %c0_31 = arith.constant 0 : index
    %c0_32 = arith.constant 0 : index
    %21 = vector.load %arg3[%c0_29, %c3, %c0_30, %c0_31, %c0_32] : memref<1x4x4x8x8xf32, #tpu.memory_space<vmem>>, vector<1x1x4x8x8xf32>
    %22 = vector.shape_cast %21 : vector<1x1x4x8x8xf32> to vector<4x8x8xf32>
    %23 = vector.shape_cast %20 : vector<4x8x8xf32> to vector<1x1x4x8x8xf32>
    tpu.vector_store %arg3[%c0_29, %c3, %c0_30, %c0_31, %c0_32], %23 {strides = array<i32>} : memref<1x4x4x8x8xf32, #tpu.memory_space<vmem>>, vector<1x1x4x8x8xf32>,
    return
  }
  func.func @transform_0(%arg0: i32, %arg1: i32) -> (i32, i32, i32, i32) {
    %c0_i32 = arith.constant 0 : i32
    %c0_i32_0 = arith.constant 0 : i32
    %c0_i32_1 = arith.constant 0 : i32
    return %arg0, %arg1, %c0_i32, %c0_i32_0 : i32, i32, i32, i32
  }
  func.func @transform_1(%arg0: i32, %arg1: i32) -> (i32, i32, i32, i32, i32) {
    %c0_i32 = arith.constant 0 : i32
    %c0_i32_0 = arith.constant 0 : i32
    %c0_i32_1 = arith.constant 0 : i32
    %c0_i32_2 = arith.constant 0 : i32
    return %arg0, %c0_i32, %arg1, %c0_i32_0, %c0_i32_1 : i32, i32, i32, i32, i32
  }
}

</mosaic_0001>

<llo_original>
// kernel: _contract_impl.1
$region0: #{_contract_impl.1}
  #allocation0 [shape = 'u32[]', space=smem, size = 0x4, offset = 0x4, fixed_abs, tag = 'smem constant byte address 0x4 - core index']
  #allocation1 [shape = 'u32[72,128]{1,0:T(1,128)}', space=vmem, size = 0x9000, scoped, tag = 'internal scratch']
  #allocation2 [shape = 'f32[4,32,8]{2,1,0:T(8,128)}', space=vmem, size = 0x10000, scoped, tag = 'scratch operand']
  %s0 = inlined_call_operand.vmem [shape: f32[2,4,8,32], index: 0, kind: input, shape index: {}]
  %s1 = inlined_call_operand.vmem [shape: f32[2,4,4,64], index: 1, kind: output, shape index: {}]
  %s2 = sld [smem:[#allocation0]]
  $region37: #{_contract_impl.1} parent=0
    _
  %s4 = ssub.s32 1, %s2
  %s5 = scalar_select 0, %s4, %s2
  loop: start=0, step=1, limit=4
  $region2: #{_contract_impl.1} parent=0 // loop_pre_header
    _
  $region3: #{_contract_impl.1} parent=0 // loop_header
    %s7 = sphi 0, %s11
    %p8 = scmp.ge.s32.totalorder %s7, 4
    %s14 = sphi 0, %s26
    %s15 = sphi 0, %s22
    %s16 = sphi 0, %s14
    %s17 = sphi 0, %s15
    %s18 = sphi 0, %s16
    %s19 = sphi 0, %s17
    %s31 = sphi 0, %s33
    %s34 = sphi 0, %s31
    %s35 = sphi 0, %s34
    %s51 = sphi 0, %s35
    %s59 = sphi 0, %s61
    %s62 = sphi 0, %s59
    %s63 = sphi 0, %s62
    %s79 = sphi 0, %s63
  $region4: #{_contract_impl.1} parent=0 // loop_header_branch
    %10 = sbr.rel (%p8) target = $region8
  $region5: #{_contract_impl.1} parent=0 // loop_body
    %s12 = ssub.s32 %s7, 1
    %s13 = ssub.s32 %s7, 2
    %s20 = sadd.s32 1, %s15
    %p21 = scmp.ge.s32.totalorder %s20, 1
    %s22 = scalar_select %p21, 0, %s20
    %s23 = sadd.s32 1, %s14
    %s24 = scalar_select %p21, %s23, %s14
    %p25 = scmp.ge.s32.totalorder %s24, 2
    %s26 = scalar_select %p25, 0, %s24
    %s27 = ssub.s32 %s14, %s26
    %s28 = ssub.s32 %s15, %s22
    %s29 = sor.u32 %s27, %s28
    %p30 = scmp.eq.s32.totalorder %s29, 0
    %s32 = sadd.s32 %s31, 1
    %s33 = scalar_select %p30, %s31, %s32
    %p36 = pneg %p30
    %p37 = scmp.eq.s32.totalorder %s7, 1
    %p38 = por %p36, %p37
    %p39 = scmp.ne.s32.totalorder %s31, %s34
    %p40 = scmp.eq.s32.totalorder %s7, 0
    %p41 = por %p39, %p40
    %p42 = scmp.ne.s32.totalorder %s31, %s34
    %p43 = scmp.eq.s32.totalorder %s12, 1
    %p44 = por %p42, %p43
    %p45 = scmp.ne.s32.totalorder %s34, %s35
    %p46 = scmp.eq.s32.totalorder %s12, 0
    %p47 = por %p45, %p46
    %p48 = scmp.ne.s32.totalorder %s34, %s35
    %p49 = scmp.eq.s32.totalorder %s13, 1
    %p50 = por %p48, %p49
    %p52 = scmp.ne.s32.totalorder %s35, %s51
    %p53 = scmp.eq.s32.totalorder %s13, 0
    %p54 = por %p52, %p53
    %s55 = ssub.s32 %s14, %s26
    %s56 = ssub.s32 %s15, %s22
    %s57 = sor.u32 %s55, %s56
    %p58 = scmp.eq.s32.totalorder %s57, 0
    %s60 = sadd.s32 %s59, 1
    %s61 = scalar_select %p58, %s59, %s60
    %p64 = pneg %p58
    %p65 = scmp.eq.s32.totalorder %s7, 1
    %p66 = por %p64, %p65
    %p67 = scmp.ne.s32.totalorder %s59, %s62
    %p68 = scmp.eq.s32.totalorder %s7, 0
    %p69 = por %p67, %p68
    %p70 = scmp.ne.s32.totalorder %s59, %s62
    %p71 = scmp.eq.s32.totalorder %s12, 1
    %p72 = por %p70, %p71
    %p73 = scmp.ne.s32.totalorder %s62, %s63
    %p74 = scmp.eq.s32.totalorder %s12, 0
    %p75 = por %p73, %p74
    %p76 = scmp.ne.s32.totalorder %s62, %s63
    %p77 = scmp.eq.s32.totalorder %s13, 1
    %p78 = por %p76, %p77
    %p80 = scmp.ne.s32.totalorder %s63, %s79
    %p81 = scmp.eq.s32.totalorder %s13, 0
    %p82 = por %p80, %p81
    %p83 = scmp.le.s32.totalorder 1, %s7
    %p84 = scmp.lt.s32.totalorder %s7, 3
    %p85 = pnand %p83, %p84
    %p86 = pneg %p85
    // Predicated region
    $region9: #{_contract_impl.1} parent=5 // pred_check
      _
    $region10: #{_contract_impl.1} parent=5 // pred_check_branch
      %88 = sbr.rel (%p85) target = $region12
    $region11: #{_contract_impl.1} parent=5 // pred_region
      %s89 = ssub.s32 %s7, 1
    $region12: #{_contract_impl.1} parent=5 // pred_fallthru
      _
    %p90 = scmp.lt.s32.totalorder %s7, 2
    // Predicated region
    $region13: #{_contract_impl.1} parent=5 // pred_check
      %p91 = pneg %p90
    $region14: #{_contract_impl.1} parent=5 // pred_check_branch
      %93 = sbr.rel (%p91) target = $region16
    $region15: #{_contract_impl.1} parent=5 // pred_region
      // Predicated region
      $region17: #{_contract_impl.1} parent=15 // pred_check
        %p94 = pneg %p41
      $region18: #{_contract_impl.1} parent=15 // pred_check_branch
        %96 = sbr.rel (%p94) target = $region20
      $region19: #{_contract_impl.1} parent=15 // pred_region
        %s97 = smul.u32 4, %s15
        %p98 = scmp.lt.s32.totalorder %s14, 1
        %s99 = scalar_select %p98, %s14, 1
        %p100 = scmp.lt.s32.totalorder %s97, 3
        %s101 = scalar_select %p100, %s97, 3
        %s102 = smul.addr %s99, 4
        %s103 = sadd.s32 %s101, %s102
        %s104 = smul.addr %s103, 8
        %s105 = scalar_lea.vmem %s0, %s104
        %s106 = smul.u32 4, %s15
      $region20: #{_contract_impl.1} parent=15 // pred_fallthru
        _
    $region16: #{_contract_impl.1} parent=5 // pred_fallthru
      _
    %p107 = scmp.le.s32.totalorder 1, %s7
    %p108 = scmp.lt.s32.totalorder %s7, 3
    %p109 = pnand %p107, %p108
    %p110 = pneg %p109
    // Predicated region
    $region21: #{_contract_impl.1} parent=5 // pred_check
      _
    $region22: #{_contract_impl.1} parent=5 // pred_check_branch
      %112 = sbr.rel (%p109) target = $region24
    $region23: #{_contract_impl.1} parent=5 // pred_region
      %s113 = ssub.s32 %s7, 1
      %s114 = smul.u32 4, %s17
      %p115 = scmp.lt.s32.totalorder %s16, 1
      %s116 = scalar_select %p115, %s16, 1
      %p117 = scmp.lt.s32.totalorder %s114, 3
      %s118 = scalar_select %p117, %s114, 3
      %s119 = smul.addr %s116, 4
      %s120 = sadd.s32 %s118, %s119
      %s121 = smul.addr %s120, 8
      %s122 = scalar_lea.vmem %s0, %s121
      %p123 = pneg %p47
      %p124 = pneg %p44
      %p125 = pneg %p75
      %p126 = pneg %p72
      %p127 = scmp.lt.s32.totalorder %s16, 1
      %s128 = scalar_select %p127, %s16, 1
      %p129 = scmp.lt.s32.totalorder %s17, 0
      %s130 = scalar_select %p129, %s17, 0
      %s131 = smul.addr %s128, 4
      %s132 = sadd.s32 %s130, %s131
      %s133 = smul.addr %s132, 4
      %s134 = scalar_lea.vmem %s1, %s133
      %s135 = smul.u32 4, %s17
      %p136 = scmp.lt.s32.totalorder %s16, 1
      %s137 = scalar_select %p136, %s16, 1
      %p138 = scmp.lt.s32.totalorder %s135, 3
      %s139 = scalar_select %p138, %s135, 3
      %s140 = smul.addr %s137, 4
      %s141 = sadd.s32 %s139, %s140
      %s142 = smul.addr %s141, 8
      %s143 = scalar_lea.vmem %s0, %s142
      %s144 = smul.u32 4, %s17
      %p145 = scmp.lt.s32.totalorder %s16, 1
      %s146 = scalar_select %p145, %s16, 1
      %p147 = scmp.lt.s32.totalorder %s17, 0
      %s148 = scalar_select %p147, %s17, 0
      %s149 = smul.addr %s146, 4
      %s150 = sadd.s32 %s148, %s149
      %s151 = smul.addr %s150, 4
      %s152 = scalar_lea.vmem %s1, %s151
      %v153 = vld [vmem:[%s143] sm:$0xff]
      %v154 = vld [vmem:[%s143 + $0x8] sm:$0xff]
      %v155 = vld [vmem:[%s143 + $0x10] sm:$0xff]
      %v156 = vld [vmem:[%s143 + $0x18] sm:$0xff]
      %157 = vxpose.xlu0.b32.start [1/16] %v153, 128
      %158 = vxpose.xlu0.b32.cont [2/16] 0.0, 128
      %159 = vxpose.xlu0.b32.cont [3/16] 0.0, 128
      %160 = vxpose.xlu0.b32.cont [4/16] 0.0, 128
      %161 = vxpose.xlu0.b32.cont [5/16] 0.0, 128
      %162 = vxpose.xlu0.b32.cont [6/16] 0.0, 128
      %163 = vxpose.xlu0.b32.cont [7/16] 0.0, 128
      %164 = vxpose.xlu0.b32.cont [8/16] 0.0, 128
      %165 = vxpose.xlu0.b32.cont [9/16] 0.0, 128
      %166 = vxpose.xlu0.b32.cont [10/16] 0.0, 128
      %167 = vxpose.xlu0.b32.cont [11/16] 0.0, 128
      %168 = vxpose.xlu0.b32.cont [12/16] 0.0, 128
      %169 = vxpose.xlu0.b32.cont [13/16] 0.0, 128
      %170 = vxpose.xlu0.b32.cont [14/16] 0.0, 128
      %171 = vxpose.xlu0.b32.cont [15/16] 0.0, 128
      %172 = vxpose.xlu0.b32.end [16/16] 0.0, 128
      %v173 = vpop.trf.xlu0
      %v174 = vpop.trf.xlu0
      %v175 = vpop.trf.xlu0
      %v176 = vpop.trf.xlu0
      %v177 = vpop.trf.xlu0
      %v178 = vpop.trf.xlu0
      %v179 = vpop.trf.xlu0
      %v180 = vpop.trf.xlu0
      %v181 = vpop.trf.xlu0
      %v182 = vpop.trf.xlu0
      %v183 = vpop.trf.xlu0
      %v184 = vpop.trf.xlu0
      %v185 = vpop.trf.xlu0
      %v186 = vpop.trf.xlu0
      %v187 = vpop.trf.xlu0
      %v188 = vpop.trf.xlu0
      %189 = vxpose.xlu0.b32.start [1/16] %v154, 128
      %190 = vxpose.xlu0.b32.cont [2/16] 0.0, 128
      %191 = vxpose.xlu0.b32.cont [3/16] 0.0, 128
      %192 = vxpose.xlu0.b32.cont [4/16] 0.0, 128
      %193 = vxpose.xlu0.b32.cont [5/16] 0.0, 128
      %194 = vxpose.xlu0.b32.cont [6/16] 0.0, 128
      %195 = vxpose.xlu0.b32.cont [7/16] 0.0, 128
      %196 = vxpose.xlu0.b32.cont [8/16] 0.0, 128
      %197 = vxpose.xlu0.b32.cont [9/16] 0.0, 128
      %198 = vxpose.xlu0.b32.cont [10/16] 0.0, 128
      %199 = vxpose.xlu0.b32.cont [11/16] 0.0, 128
      %200 = vxpose.xlu0.b32.cont [12/16] 0.0, 128
      %201 = vxpose.xlu0.b32.cont [13/16] 0.0, 128
      %202 = vxpose.xlu0.b32.cont [14/16] 0.0, 128
      %203 = vxpose.xlu0.b32.cont [15/16] 0.0, 128
      %204 = vxpose.xlu0.b32.end [16/16] 0.0, 128
      %v205 = vpop.trf.xlu0
      %v206 = vpop.trf.xlu0
      %v207 = vpop.trf.xlu0
      %v208 = vpop.trf.xlu0
      %v209 = vpop.trf.xlu0
      %v210 = vpop.trf.xlu0
      %v211 = vpop.trf.xlu0
      %v212 = vpop.trf.xlu0
      %v213 = vpop.trf.xlu0
      %v214 = vpop.trf.xlu0
      %v215 = vpop.trf.xlu0
      %v216 = vpop.trf.xlu0
      %v217 = vpop.trf.xlu0
      %v218 = vpop.trf.xlu0
      %v219 = vpop.trf.xlu0
      %v220 = vpop.trf.xlu0
      %221 = vxpose.xlu0.b32.start [1/16] %v155, 128
      %222 = vxpose.xlu0.b32.cont [2/16] 0.0, 128
      %223 = vxpose.xlu0.b32.cont [3/16] 0.0, 128
      %224 = vxpose.xlu0.b32.cont [4/16] 0.0, 128
      %225 = vxpose.xlu0.b32.cont [5/16] 0.0, 128
      %226 = vxpose.xlu0.b32.cont [6/16] 0.0, 128
      %227 = vxpose.xlu0.b32.cont [7/16] 0.0, 128
      %228 = vxpose.xlu0.b32.cont [8/16] 0.0, 128
      %229 = vxpose.xlu0.b32.cont [9/16] 0.0, 128
      %230 = vxpose.xlu0.b32.cont [10/16] 0.0, 128
      %231 = vxpose.xlu0.b32.cont [11/16] 0.0, 128
      %232 = vxpose.xlu0.b32.cont [12/16] 0.0, 128
      %233 = vxpose.xlu0.b32.cont [13/16] 0.0, 128
      %234 = vxpose.xlu0.b32.cont [14/16] 0.0, 128
      %235 = vxpose.xlu0.b32.cont [15/16] 0.0, 128
      %236 = vxpose.xlu0.b32.end [16/16] 0.0, 128
      %v237 = vpop.trf.xlu0
      %v238 = vpop.trf.xlu0
      %v239 = vpop.trf.xlu0
      %v240 = vpop.trf.xlu0
      %v241 = vpop.trf.xlu0
      %v242 = vpop.trf.xlu0
      %v243 = vpop.trf.xlu0
      %v244 = vpop.trf.xlu0
      %v245 = vpop.trf.xlu0
      %v246 = vpop.trf.xlu0
      %v247 = vpop.trf.xlu0
      %v248 = vpop.trf.xlu0
      %v249 = vpop.trf.xlu0
      %v250 = vpop.trf.xlu0
      %v251 = vpop.trf.xlu0
      %v252 = vpop.trf.xlu0
      %253 = vxpose.xlu0.b32.start [1/16] %v156, 128
      %254 = vxpose.xlu0.b32.cont [2/16] 0.0, 128
      %255 = vxpose.xlu0.b32.cont [3/16] 0.0, 128
      %256 = vxpose.xlu0.b32.cont [4/16] 0.0, 128
      %257 = vxpose.xlu0.b32.cont [5/16] 0.0, 128
      %258 = vxpose.xlu0.b32.cont [6/16] 0.0, 128
      %259 = vxpose.xlu0.b32.cont [7/16] 0.0, 128
      %260 = vxpose.xlu0.b32.cont [8/16] 0.0, 128
      %261 = vxpose.xlu0.b32.cont [9/16] 0.0, 128
      %262 = vxpose.xlu0.b32.cont [10/16] 0.0, 128
      %263 = vxpose.xlu0.b32.cont [11/16] 0.0, 128
      %264 = vxpose.xlu0.b32.cont [12/16] 0.0, 128
      %265 = vxpose.xlu0.b32.cont [13/16] 0.0, 128
      %266 = vxpose.xlu0.b32.cont [14/16] 0.0, 128
      %267 = vxpose.xlu0.b32.cont [15/16] 0.0, 128
      %268 = vxpose.xlu0.b32.end [16/16] 0.0, 128
      %v269 = vpop.trf.xlu0
      %v270 = vpop.trf.xlu0
      %v271 = vpop.trf.xlu0
      %v272 = vpop.trf.xlu0
      %v273 = vpop.trf.xlu0
      %v274 = vpop.trf.xlu0
      %v275 = vpop.trf.xlu0
      %v276 = vpop.trf.xlu0
      %v277 = vpop.trf.xlu0
      %v278 = vpop.trf.xlu0
      %v279 = vpop.trf.xlu0
      %v280 = vpop.trf.xlu0
      %v281 = vpop.trf.xlu0
      %v282 = vpop.trf.xlu0
      %v283 = vpop.trf.xlu0
      %v284 = vpop.trf.xlu0
      %vm285 = vcmask 64512
      %286 = vst.msk [vmem:[#allocation2] sm:$0xff] %vm285, %v173
      %287 = vst.msk [vmem:[#allocation2 + $0x8] sm:$0xff] %vm285, %v174
      %288 = vst.msk [vmem:[#allocation2 + $0x10] sm:$0xff] %vm285, %v175
      %289 = vst.msk [vmem:[#allocation2 + $0x18] sm:$0xff] %vm285, %v176
      %290 = vst.msk [vmem:[#allocation2 + $0x20] sm:$0xff] %vm285, %v205
      %291 = vst.msk [vmem:[#allocation2 + $0x28] sm:$0xff] %vm285, %v206
      %292 = vst.msk [vmem:[#allocation2 + $0x30] sm:$0xff] %vm285, %v207
      %293 = vst.msk [vmem:[#allocation2 + $0x38] sm:$0xff] %vm285, %v208
      %294 = vst.msk [vmem:[#allocation2 + $0x40] sm:$0xff] %vm285, %v237
      %295 = vst.msk [vmem:[#allocation2 + $0x48] sm:$0xff] %vm285, %v238
      %296 = vst.msk [vmem:[#allocation2 + $0x50] sm:$0xff] %vm285, %v239
      %297 = vst.msk [vmem:[#allocation2 + $0x58] sm:$0xff] %vm285, %v240
      %298 = vst.msk [vmem:[#allocation2 + $0x60] sm:$0xff] %vm285, %v269
      %299 = vst.msk [vmem:[#allocation2 + $0x68] sm:$0xff] %vm285, %v270
      %300 = vst.msk [vmem:[#allocation2 + $0x70] sm:$0xff] %vm285, %v271
      %301 = vst.msk [vmem:[#allocation2 + $0x78] sm:$0xff] %vm285, %v272
      %v302 = vld [vmem:[#allocation2] ss:$2 sm:$0xff]
      %s303 = scalar_lea.vmem [#allocation2], 32
      %v304 = vld [vmem:[%s303] ss:$2 sm:$0xff]
      %s305 = scalar_lea.vmem [#allocation2], 64
      %v306 = vld [vmem:[%s305] ss:$2 sm:$0xff]
      %s307 = scalar_lea.vmem [#allocation2], 96
      %v308 = vld [vmem:[%s307] ss:$2 sm:$0xff]
      %309 = vxpose.xlu0.b32.start [1/16] %v302, 128
      %310 = vxpose.xlu0.b32.cont [2/16] 0.0, 128
      %311 = vxpose.xlu0.b32.cont [3/16] 0.0, 128
      %312 = vxpose.xlu0.b32.cont [4/16] 0.0, 128
      %313 = vxpose.xlu0.b32.cont [5/16] 0.0, 128
      %314 = vxpose.xlu0.b32.cont [6/16] 0.0, 128
      %315 = vxpose.xlu0.b32.cont [7/16] 0.0, 128
      %316 = vxpose.xlu0.b32.cont [8/16] 0.0, 128
      %317 = vxpose.xlu0.b32.cont [9/16] 0.0, 128
      %318 = vxpose.xlu0.b32.cont [10/16] 0.0, 128
      %319 = vxpose.xlu0.b32.cont [11/16] 0.0, 128
      %320 = vxpose.xlu0.b32.cont [12/16] 0.0, 128
      %321 = vxpose.xlu0.b32.cont [13/16] 0.0, 128
      %322 = vxpose.xlu0.b32.cont [14/16] 0.0, 128
      %323 = vxpose.xlu0.b32.cont [15/16] 0.0, 128
      %324 = vxpose.xlu0.b32.end [16/16] 0.0, 128
      %v325 = vpop.trf.xlu0
      %v326 = vpop.trf.xlu0
      %v327 = vpop.trf.xlu0
      %v328 = vpop.trf.xlu0
      %v329 = vpop.trf.xlu0
      %v330 = vpop.trf.xlu0
      %v331 = vpop.trf.xlu0
      %v332 = vpop.trf.xlu0
      %v333 = vpop.trf.xlu0
      %v334 = vpop.trf.xlu0
      %v335 = vpop.trf.xlu0
      %v336 = vpop.trf.xlu0
      %v337 = vpop.trf.xlu0
      %v338 = vpop.trf.xlu0
      %v339 = vpop.trf.xlu0
      %v340 = vpop.trf.xlu0
      %341 = vxpose.xlu0.b32.start [1/16] %v304, 128
      %342 = vxpose.xlu0.b32.cont [2/16] 0.0, 128
      %343 = vxpose.xlu0.b32.cont [3/16] 0.0, 128
      %344 = vxpose.xlu0.b32.cont [4/16] 0.0, 128
      %345 = vxpose.xlu0.b32.cont [5/16] 0.0, 128
      %346 = vxpose.xlu0.b32.cont [6/16] 0.0, 128
      %347 = vxpose.xlu0.b32.cont [7/16] 0.0, 128
      %348 = vxpose.xlu0.b32.cont [8/16] 0.0, 128
      %349 = vxpose.xlu0.b32.cont [9/16] 0.0, 128
      %350 = vxpose.xlu0.b32.cont [10/16] 0.0, 128
      %351 = vxpose.xlu0.b32.cont [11/16] 0.0, 128
      %352 = vxpose.xlu0.b32.cont [12/16] 0.0, 128
      %353 = vxpose.xlu0.b32.cont [13/16] 0.0, 128
      %354 = vxpose.xlu0.b32.cont [14/16] 0.0, 128
      %355 = vxpose.xlu0.b32.cont [15/16] 0.0, 128
      %356 = vxpose.xlu0.b32.end [16/16] 0.0, 128
      %v357 = vpop.trf.xlu0
      %v358 = vpop.trf.xlu0
      %v359 = vpop.trf.xlu0
      %v360 = vpop.trf.xlu0
      %v361 = vpop.trf.xlu0
      %v362 = vpop.trf.xlu0
      %v363 = vpop.trf.xlu0
      %v364 = vpop.trf.xlu0
      %v365 = vpop.trf.xlu0
      %v366 = vpop.trf.xlu0
      %v367 = vpop.trf.xlu0
      %v368 = vpop.trf.xlu0
      %v369 = vpop.trf.xlu0
      %v370 = vpop.trf.xlu0
      %v371 = vpop.trf.xlu0
      %v372 = vpop.trf.xlu0
      %373 = vxpose.xlu0.b32.start [1/16] %v306, 128
      %374 = vxpose.xlu0.b32.cont [2/16] 0.0, 128
      %375 = vxpose.xlu0.b32.cont [3/16] 0.0, 128
      %376 = vxpose.xlu0.b32.cont [4/16] 0.0, 128
      %377 = vxpose.xlu0.b32.cont [5/16] 0.0, 128
      %378 = vxpose.xlu0.b32.cont [6/16] 0.0, 128
      %379 = vxpose.xlu0.b32.cont [7/16] 0.0, 128
      %380 = vxpose.xlu0.b32.cont [8/16] 0.0, 128
      %381 = vxpose.xlu0.b32.cont [9/16] 0.0, 128
      %382 = vxpose.xlu0.b32.cont [10/16] 0.0, 128
      %383 = vxpose.xlu0.b32.cont [11/16] 0.0, 128
      %384 = vxpose.xlu0.b32.cont [12/16] 0.0, 128
      %385 = vxpose.xlu0.b32.cont [13/16] 0.0, 128
      %386 = vxpose.xlu0.b32.cont [14/16] 0.0, 128
      %387 = vxpose.xlu0.b32.cont [15/16] 0.0, 128
      %388 = vxpose.xlu0.b32.end [16/16] 0.0, 128
      %v389 = vpop.trf.xlu0
      %v390 = vpop.trf.xlu0
      %v391 = vpop.trf.xlu0
      %v392 = vpop.trf.xlu0
      %v393 = vpop.trf.xlu0
      %v394 = vpop.trf.xlu0
      %v395 = vpop.trf.xlu0
      %v396 = vpop.trf.xlu0
      %v397 = vpop.trf.xlu0
      %v398 = vpop.trf.xlu0
      %v399 = vpop.trf.xlu0
      %v400 = vpop.trf.xlu0
      %v401 = vpop.trf.xlu0
      %v402 = vpop.trf.xlu0
      %v403 = vpop.trf.xlu0
      %v404 = vpop.trf.xlu0
      %405 = vxpose.xlu0.b32.start [1/16] %v308, 128
      %406 = vxpose.xlu0.b32.cont [2/16] 0.0, 128
      %407 = vxpose.xlu0.b32.cont [3/16] 0.0, 128
      %408 = vxpose.xlu0.b32.cont [4/16] 0.0, 128
      %409 = vxpose.xlu0.b32.cont [5/16] 0.0, 128
      %410 = vxpose.xlu0.b32.cont [6/16] 0.0, 128
      %411 = vxpose.xlu0.b32.cont [7/16] 0.0, 128
      %412 = vxpose.xlu0.b32.cont [8/16] 0.0, 128
      %413 = vxpose.xlu0.b32.cont [9/16] 0.0, 128
      %414 = vxpose.xlu0.b32.cont [10/16] 0.0, 128
      %415 = vxpose.xlu0.b32.cont [11/16] 0.0, 128
      %416 = vxpose.xlu0.b32.cont [12/16] 0.0, 128
      %417 = vxpose.xlu0.b32.cont [13/16] 0.0, 128
      %418 = vxpose.xlu0.b32.cont [14/16] 0.0, 128
      %419 = vxpose.xlu0.b32.cont [15/16] 0.0, 128
      %420 = vxpose.xlu0.b32.end [16/16] 0.0, 128
      %v421 = vpop.trf.xlu0
      %v422 = vpop.trf.xlu0
      %v423 = vpop.trf.xlu0
      %v424 = vpop.trf.xlu0
      %v425 = vpop.trf.xlu0
      %v426 = vpop.trf.xlu0
      %v427 = vpop.trf.xlu0
      %v428 = vpop.trf.xlu0
      %v429 = vpop.trf.xlu0
      %v430 = vpop.trf.xlu0
      %v431 = vpop.trf.xlu0
      %v432 = vpop.trf.xlu0
      %v433 = vpop.trf.xlu0
      %v434 = vpop.trf.xlu0
      %v435 = vpop.trf.xlu0
      %v436 = vpop.trf.xlu0
      %v437 = vrot.slane %v389, 4
      %vm438 = vcmask 1047556
      %v439 = vsel %vm438, %v437, %v325
      %v440 = vrot.slane %v325, 4
      %v441 = vsel %vm438, %v389, %v440
      %v443 = vunpack.c.l.s4 1983009808
      %v444 = vunpack.c.0.s8 %v443
      %v445 = vperm.slane %v439, %v444
      %v447 = vunpack.c.l.s4 1983009808
      %v448 = vunpack.c.0.s8 %v447
      %v449 = vperm.slane %v441, %v448
      %v450 = vrot.slane %v421, 4
      %v451 = vsel %vm438, %v450, %v357
      %v452 = vrot.slane %v357, 4
      %v453 = vsel %vm438, %v421, %v452
      %v455 = vunpack.c.l.s4 1983009808
      %v456 = vunpack.c.0.s8 %v455
      %v457 = vperm.slane %v451, %v456
      %v459 = vunpack.c.l.s4 1983009808
      %v460 = vunpack.c.0.s8 %v459
      %v461 = vperm.slane %v453, %v460
      %v462 = vrot.slane %v457, 4
      %v463 = vsel %vm438, %v462, %v445
      %v464 = vrot.slane %v445, 4
      %v465 = vsel %vm438, %v457, %v464
      %v467 = vunpack.c.l.s4 1934713408
      %v468 = vunpack.c.0.s8 %v467
      %v469 = vperm.slane %v463, %v468
      %v471 = vunpack.c.l.s4 1934713408
      %v472 = vunpack.c.0.s8 %v471
      %v473 = vperm.slane %v465, %v472
      %v474 = vrot.slane %v461, 4
      %v475 = vsel %vm438, %v474, %v449
      %v476 = vrot.slane %v449, 4
      %v477 = vsel %vm438, %v461, %v476
      %v479 = vunpack.c.l.s4 1934713408
      %v480 = vunpack.c.0.s8 %v479
      %v481 = vperm.slane %v475, %v480
      %v483 = vunpack.c.l.s4 1934713408
      %v484 = vunpack.c.0.s8 %v483
      %v485 = vperm.slane %v477, %v484
      %v486 = vrot.slane %v469, 4
      %v487 = vsel %vm438, 0.0, %v486
      %v488 = vrot.slane %v473, 4
      %v489 = vsel %vm438, 0.0, %v488
      %v490 = vrot.slane %v481, 4
      %v491 = vsel %vm438, 0.0, %v490
      %v492 = vrot.slane %v485, 4
      %v493 = vsel %vm438, 0.0, %v492
      %495 = vrot.lane.b32.xlu0 %v487, 8
      %v496 = vpop.permute.xlu0 %495
      %499 = vrot.lane.b32.xlu0 %v473, 16
      %v500 = vpop.permute.xlu0 %499
      %503 = vrot.lane.b32.xlu0 %v489, 24
      %v504 = vpop.permute.xlu0 %503
      %507 = vrot.lane.b32.xlu0 %v481, 32
      %v508 = vpop.permute.xlu0 %507
      %511 = vrot.lane.b32.xlu0 %v491, 40
      %v512 = vpop.permute.xlu0 %511
      %515 = vrot.lane.b32.xlu0 %v485, 48
      %v516 = vpop.permute.xlu0 %515
      %519 = vrot.lane.b32.xlu0 %v493, 56
      %v520 = vpop.permute.xlu0 %519
      %v522 = vsel %vm285, %v469, %v496
      %vm523 = vcmask 130048
      %v524 = vsel %vm523, %v522, %v500
      %vm525 = vcmask 195584
      %v526 = vsel %vm525, %v524, %v504
      %vm527 = vcmask 261120
      %v528 = vsel %vm527, %v526, %v508
      %vm529 = vcmask 326656
      %v530 = vsel %vm529, %v528, %v512
      %vm531 = vcmask 392192
      %v532 = vsel %vm531, %v530, %v516
      %vm533 = vcmask 457728
      %v534 = vsel %vm533, %v532, %v520
      %vm535 = vcmask 519168
      %536 = vst.msk [vmem:[%s152] sm:$0xf] %vm535, %v534
      %s537 = scalar_lea.vmem [#allocation2], 1
      %v538 = vld [vmem:[%s537] ss:$2 sm:$0xff]
      %s539 = scalar_lea.vmem [#allocation2], 33
      %v540 = vld [vmem:[%s539] ss:$2 sm:$0xff]
      %s541 = scalar_lea.vmem [#allocation2], 65
      %v542 = vld [vmem:[%s541] ss:$2 sm:$0xff]
      %s543 = scalar_lea.vmem [#allocation2], 97
      %v544 = vld [vmem:[%s543] ss:$2 sm:$0xff]
      %545 = vxpose.xlu0.b32.start [1/16] %v538, 128
      %546 = vxpose.xlu0.b32.cont [2/16] 0.0, 128
      %547 = vxpose.xlu0.b32.cont [3/16] 0.0, 128
      %548 = vxpose.xlu0.b32.cont [4/16] 0.0, 128
      %549 = vxpose.xlu0.b32.cont [5/16] 0.0, 128
      %550 = vxpose.xlu0.b32.cont [6/16] 0.0, 128
      %551 = vxpose.xlu0.b32.cont [7/16] 0.0, 128
      %552 = vxpose.xlu0.b32.cont [8/16] 0.0, 128
      %553 = vxpose.xlu0.b32.cont [9/16] 0.0, 128
      %554 = vxpose.xlu0.b32.cont [10/16] 0.0, 128
      %555 = vxpose.xlu0.b32.cont [11/16] 0.0, 128
      %556 = vxpose.xlu0.b32.cont [12/16] 0.0, 128
      %557 = vxpose.xlu0.b32.cont [13/16] 0.0, 128
      %558 = vxpose.xlu0.b32.cont [14/16] 0.0, 128
      %559 = vxpose.xlu0.b32.cont [15/16] 0.0, 128
      %560 = vxpose.xlu0.b32.end [16/16] 0.0, 128
      %v561 = vpop.trf.xlu0
      %v562 = vpop.trf.xlu0
      %v563 = vpop.trf.xlu0
      %v564 = vpop.trf.xlu0
      %v565 = vpop.trf.xlu0
      %v566 = vpop.trf.xlu0
      %v567 = vpop.trf.xlu0
      %v568 = vpop.trf.xlu0
      %v569 = vpop.trf.xlu0
      %v570 = vpop.trf.xlu0
      %v571 = vpop.trf.xlu0
      %v572 = vpop.trf.xlu0
      %v573 = vpop.trf.xlu0
      %v574 = vpop.trf.xlu0
      %v575 = vpop.trf.xlu0
      %v576 = vpop.trf.xlu0
      %577 = vxpose.xlu0.b32.start [1/16] %v540, 128
      %578 = vxpose.xlu0.b32.cont [2/16] 0.0, 128
      %579 = vxpose.xlu0.b32.cont [3/16] 0.0, 128
      %580 = vxpose.xlu0.b32.cont [4/16] 0.0, 128
      %581 = vxpose.xlu0.b32.cont [5/16] 0.0, 128
      %582 = vxpose.xlu0.b32.cont [6/16] 0.0, 128
      %583 = vxpose.xlu0.b32.cont [7/16] 0.0, 128
      %584 = vxpose.xlu0.b32.cont [8/16] 0.0, 128
      %585 = vxpose.xlu0.b32.cont [9/16] 0.0, 128
      %586 = vxpose.xlu0.b32.cont [10/16] 0.0, 128
      %587 = vxpose.xlu0.b32.cont [11/16] 0.0, 128
      %588 = vxpose.xlu0.b32.cont [12/16] 0.0, 128
      %589 = vxpose.xlu0.b32.cont [13/16] 0.0, 128
      %590 = vxpose.xlu0.b32.cont [14/16] 0.0, 128
      %591 = vxpose.xlu0.b32.cont [15/16] 0.0, 128
      %592 = vxpose.xlu0.b32.end [16/16] 0.0, 128
      %v593 = vpop.trf.xlu0
      %v594 = vpop.trf.xlu0
      %v595 = vpop.trf.xlu0
      %v596 = vpop.trf.xlu0
      %v597 = vpop.trf.xlu0
      %v598 = vpop.trf.xlu0
      %v599 = vpop.trf.xlu0
      %v600 = vpop.trf.xlu0
      %v601 = vpop.trf.xlu0
      %v602 = vpop.trf.xlu0
      %v603 = vpop.trf.xlu0
      %v604 = vpop.trf.xlu0
      %v605 = vpop.trf.xlu0
      %v606 = vpop.trf.xlu0
      %v607 = vpop.trf.xlu0
      %v608 = vpop.trf.xlu0
      %609 = vxpose.xlu0.b32.start [1/16] %v542, 128
      %610 = vxpose.xlu0.b32.cont [2/16] 0.0, 128
      %611 = vxpose.xlu0.b32.cont [3/16] 0.0, 128
      %612 = vxpose.xlu0.b32.cont [4/16] 0.0, 128
      %613 = vxpose.xlu0.b32.cont [5/16] 0.0, 128
      %614 = vxpose.xlu0.b32.cont [6/16] 0.0, 128
      %615 = vxpose.xlu0.b32.cont [7/16] 0.0, 128
      %616 = vxpose.xlu0.b32.cont [8/16] 0.0, 128
      %617 = vxpose.xlu0.b32.cont [9/16] 0.0, 128
      %618 = vxpose.xlu0.b32.cont [10/16] 0.0, 128
      %619 = vxpose.xlu0.b32.cont [11/16] 0.0, 128
      %620 = vxpose.xlu0.b32.cont [12/16] 0.0, 128
      %621 = vxpose.xlu0.b32.cont [13/16] 0.0, 128
      %622 = vxpose.xlu0.b32.cont [14/16] 0.0, 128
      %623 = vxpose.xlu0.b32.cont [15/16] 0.0, 128
      %624 = vxpose.xlu0.b32.end [16/16] 0.0, 128
      %v625 = vpop.trf.xlu0
      %v626 = vpop.trf.xlu0
      %v627 = vpop.trf.xlu0
      %v628 = vpop.trf.xlu0
      %v629 = vpop.trf.xlu0
      %v630 = vpop.trf.xlu0
      %v631 = vpop.trf.xlu0
      %v632 = vpop.trf.xlu0
      %v633 = vpop.trf.xlu0
      %v634 = vpop.trf.xlu0
      %v635 = vpop.trf.xlu0
      %v636 = vpop.trf.xlu0
      %v637 = vpop.trf.xlu0
      %v638 = vpop.trf.xlu0
      %v639 = vpop.trf.xlu0
      %v640 = vpop.trf.xlu0
      %641 = vxpose.xlu0.b32.start [1/16] %v544, 128
      %642 = vxpose.xlu0.b32.cont [2/16] 0.0, 128
      %643 = vxpose.xlu0.b32.cont [3/16] 0.0, 128
      %644 = vxpose.xlu0.b32.cont [4/16] 0.0, 128
      %645 = vxpose.xlu0.b32.cont [5/16] 0.0, 128
      %646 = vxpose.xlu0.b32.cont [6/16] 0.0, 128
      %647 = vxpose.xlu0.b32.cont [7/16] 0.0, 128
      %648 = vxpose.xlu0.b32.cont [8/16] 0.0, 128
      %649 = vxpose.xlu0.b32.cont [9/16] 0.0, 128
      %650 = vxpose.xlu0.b32.cont [10/16] 0.0, 128
      %651 = vxpose.xlu0.b32.cont [11/16] 0.0, 128
      %652 = vxpose.xlu0.b32.cont [12/16] 0.0, 128
      %653 = vxpose.xlu0.b32.cont [13/16] 0.0, 128
      %654 = vxpose.xlu0.b32.cont [14/16] 0.0, 128
      %655 = vxpose.xlu0.b32.cont [15/16] 0.0, 128
      %656 = vxpose.xlu0.b32.end [16/16] 0.0, 128
      %v657 = vpop.trf.xlu0
      %v658 = vpop.trf.xlu0
      %v659 = vpop.trf.xlu0
      %v660 = vpop.trf.xlu0
      %v661 = vpop.trf.xlu0
      %v662 = vpop.trf.xlu0
      %v663 = vpop.trf.xlu0
      %v664 = vpop.trf.xlu0
      %v665 = vpop.trf.xlu0
      %v666 = vpop.trf.xlu0
      %v667 = vpop.trf.xlu0
      %v668 = vpop.trf.xlu0
      %v669 = vpop.trf.xlu0
      %v670 = vpop.trf.xlu0
      %v671 = vpop.trf.xlu0
      %v672 = vpop.trf.xlu0
      %v673 = vrot.slane %v625, 4
      %v674 = vsel %vm438, %v673, %v561
      %v675 = vrot.slane %v561, 4
      %v676 = vsel %vm438, %v625, %v675
      %v678 = vunpack.c.l.s4 1983009808
      %v679 = vunpack.c.0.s8 %v678
      %v680 = vperm.slane %v674, %v679
      %v682 = vunpack.c.l.s4 1983009808
      %v683 = vunpack.c.0.s8 %v682
      %v684 = vperm.slane %v676, %v683
      %v685 = vrot.slane %v657, 4
      %v686 = vsel %vm438, %v685, %v593
      %v687 = vrot.slane %v593, 4
      %v688 = vsel %vm438, %v657, %v687
      %v690 = vunpack.c.l.s4 1983009808
      %v691 = vunpack.c.0.s8 %v690
      %v692 = vperm.slane %v686, %v691
      %v694 = vunpack.c.l.s4 1983009808
      %v695 = vunpack.c.0.s8 %v694
      %v696 = vperm.slane %v688, %v695
      %v697 = vrot.slane %v692, 4
      %v698 = vsel %vm438, %v697, %v680
      %v699 = vrot.slane %v680, 4
      %v700 = vsel %vm438, %v692, %v699
      %v702 = vunpack.c.l.s4 1934713408
      %v703 = vunpack.c.0.s8 %v702
      %v704 = vperm.slane %v698, %v703
      %v706 = vunpack.c.l.s4 1934713408
      %v707 = vunpack.c.0.s8 %v706
      %v708 = vperm.slane %v700, %v707
      %v709 = vrot.slane %v696, 4
      %v710 = vsel %vm438, %v709, %v684
      %v711 = vrot.slane %v684, 4
      %v712 = vsel %vm438, %v696, %v711
      %v714 = vunpack.c.l.s4 1934713408
      %v715 = vunpack.c.0.s8 %v714
      %v716 = vperm.slane %v710, %v715
      %v718 = vunpack.c.l.s4 1934713408
      %v719 = vunpack.c.0.s8 %v718
      %v720 = vperm.slane %v712, %v719
      %v721 = vrot.slane %v704, 4
      %v722 = vsel %vm438, 0.0, %v721
      %v723 = vrot.slane %v708, 4
      %v724 = vsel %vm438, 0.0, %v723
      %v725 = vrot.slane %v716, 4
      %v726 = vsel %vm438, 0.0, %v725
      %v727 = vrot.slane %v720, 4
      %v728 = vsel %vm438, 0.0, %v727
      %730 = vrot.lane.b32.xlu0 %v722, 8
      %v731 = vpop.permute.xlu0 %730
      %734 = vrot.lane.b32.xlu0 %v708, 16
      %v735 = vpop.permute.xlu0 %734
      %738 = vrot.lane.b32.xlu0 %v724, 24
      %v739 = vpop.permute.xlu0 %738
      %742 = vrot.lane.b32.xlu0 %v716, 32
      %v743 = vpop.permute.xlu0 %742
      %746 = vrot.lane.b32.xlu0 %v726, 40
      %v747 = vpop.permute.xlu0 %746
      %750 = vrot.lane.b32.xlu0 %v720, 48
      %v751 = vpop.permute.xlu0 %750
      %754 = vrot.lane.b32.xlu0 %v728, 56
      %v755 = vpop.permute.xlu0 %754
      %v757 = vsel %vm285, %v704, %v731
      %v758 = vsel %vm523, %v757, %v735
      %v759 = vsel %vm525, %v758, %v739
      %v760 = vsel %vm527, %v759, %v743
      %v761 = vsel %vm529, %v760, %v747
      %v762 = vsel %vm531, %v761, %v751
      %v763 = vsel %vm533, %v762, %v755
      %s764 = scalar_lea.vmem %s152, 4
      %765 = vst.msk [vmem:[%s764] sm:$0xf] %vm535, %v763
      %s766 = scalar_lea.vmem [#allocation2], 16
      %v767 = vld [vmem:[%s766] ss:$2 sm:$0xff]
      %s768 = scalar_lea.vmem [#allocation2], 48
      %v769 = vld [vmem:[%s768] ss:$2 sm:$0xff]
      %s770 = scalar_lea.vmem [#allocation2], 80
      %v771 = vld [vmem:[%s770] ss:$2 sm:$0xff]
      %s772 = scalar_lea.vmem [#allocation2], 112
      %v773 = vld [vmem:[%s772] ss:$2 sm:$0xff]
      %774 = vxpose.xlu0.b32.start [1/16] %v767, 128
      %775 = vxpose.xlu0.b32.cont [2/16] 0.0, 128
      %776 = vxpose.xlu0.b32.cont [3/16] 0.0, 128
      %777 = vxpose.xlu0.b32.cont [4/16] 0.0, 128
      %778 = vxpose.xlu0.b32.cont [5/16] 0.0, 128
      %779 = vxpose.xlu0.b32.cont [6/16] 0.0, 128
      %780 = vxpose.xlu0.b32.cont [7/16] 0.0, 128
      %781 = vxpose.xlu0.b32.cont [8/16] 0.0, 128
      %782 = vxpose.xlu0.b32.cont [9/16] 0.0, 128
      %783 = vxpose.xlu0.b32.cont [10/16] 0.0, 128
      %784 = vxpose.xlu0.b32.cont [11/16] 0.0, 128
      %785 = vxpose.xlu0.b32.cont [12/16] 0.0, 128
      %786 = vxpose.xlu0.b32.cont [13/16] 0.0, 128
      %787 = vxpose.xlu0.b32.cont [14/16] 0.0, 128
      %788 = vxpose.xlu0.b32.cont [15/16] 0.0, 128
      %789 = vxpose.xlu0.b32.end [16/16] 0.0, 128
      %v790 = vpop.trf.xlu0
      %v791 = vpop.trf.xlu0
      %v792 = vpop.trf.xlu0
      %v793 = vpop.trf.xlu0
      %v794 = vpop.trf.xlu0
      %v795 = vpop.trf.xlu0
      %v796 = vpop.trf.xlu0
      %v797 = vpop.trf.xlu0
      %v798 = vpop.trf.xlu0
      %v799 = vpop.trf.xlu0
      %v800 = vpop.trf.xlu0
      %v801 = vpop.trf.xlu0
      %v802 = vpop.trf.xlu0
      %v803 = vpop.trf.xlu0
      %v804 = vpop.trf.xlu0
      %v805 = vpop.trf.xlu0
      %806 = vxpose.xlu0.b32.start [1/16] %v769, 128
      %807 = vxpose.xlu0.b32.cont [2/16] 0.0, 128
      %808 = vxpose.xlu0.b32.cont [3/16] 0.0, 128
      %809 = vxpose.xlu0.b32.cont [4/16] 0.0, 128
      %810 = vxpose.xlu0.b32.cont [5/16] 0.0, 128
      %811 = vxpose.xlu0.b32.cont [6/16] 0.0, 128
      %812 = vxpose.xlu0.b32.cont [7/16] 0.0, 128
      %813 = vxpose.xlu0.b32.cont [8/16] 0.0, 128
      %814 = vxpose.xlu0.b32.cont [9/16] 0.0, 128
      %815 = vxpose.xlu0.b32.cont [10/16] 0.0, 128
      %816 = vxpose.xlu0.b32.cont [11/16] 0.0, 128
      %817 = vxpose.xlu0.b32.cont [12/16] 0.0, 128
      %818 = vxpose.xlu0.b32.cont [13/16] 0.0, 128
      %819 = vxpose.xlu0.b32.cont [14/16] 0.0, 128
      %820 = vxpose.xlu0.b32.cont [15/16] 0.0, 128
      %821 = vxpose.xlu0.b32.end [16/16] 0.0, 128
      %v822 = vpop.trf.xlu0
      %v823 = vpop.trf.xlu0
      %v824 = vpop.trf.xlu0
      %v825 = vpop.trf.xlu0
      %v826 = vpop.trf.xlu0
      %v827 = vpop.trf.xlu0
      %v828 = vpop.trf.xlu0
      %v829 = vpop.trf.xlu0
      %v830 = vpop.trf.xlu0
      %v831 = vpop.trf.xlu0
      %v832 = vpop.trf.xlu0
      %v833 = vpop.trf.xlu0
      %v834 = vpop.trf.xlu0
      %v835 = vpop.trf.xlu0
      %v836 = vpop.trf.xlu0
      %v837 = vpop.trf.xlu0
      %838 = vxpose.xlu0.b32.start [1/16] %v771, 128
      %839 = vxpose.xlu0.b32.cont [2/16] 0.0, 128
      %840 = vxpose.xlu0.b32.cont [3/16] 0.0, 128
      %841 = vxpose.xlu0.b32.cont [4/16] 0.0, 128
      %842 = vxpose.xlu0.b32.cont [5/16] 0.0, 128
      %843 = vxpose.xlu0.b32.cont [6/16] 0.0, 128
      %844 = vxpose.xlu0.b32.cont [7/16] 0.0, 128
      %845 = vxpose.xlu0.b32.cont [8/16] 0.0, 128
      %846 = vxpose.xlu0.b32.cont [9/16] 0.0, 128
      %847 = vxpose.xlu0.b32.cont [10/16] 0.0, 128
      %848 = vxpose.xlu0.b32.cont [11/16] 0.0, 128
      %849 = vxpose.xlu0.b32.cont [12/16] 0.0, 128
      %850 = vxpose.xlu0.b32.cont [13/16] 0.0, 128
      %851 = vxpose.xlu0.b32.cont [14/16] 0.0, 128
      %852 = vxpose.xlu0.b32.cont [15/16] 0.0, 128
      %853 = vxpose.xlu0.b32.end [16/16] 0.0, 128
      %v854 = vpop.trf.xlu0
      %v855 = vpop.trf.xlu0
      %v856 = vpop.trf.xlu0
      %v857 = vpop.trf.xlu0
      %v858 = vpop.trf.xlu0
      %v859 = vpop.trf.xlu0
      %v860 = vpop.trf.xlu0
      %v861 = vpop.trf.xlu0
      %v862 = vpop.trf.xlu0
      %v863 = vpop.trf.xlu0
      %v864 = vpop.trf.xlu0
      %v865 = vpop.trf.xlu0
      %v866 = vpop.trf.xlu0
      %v867 = vpop.trf.xlu0
      %v868 = vpop.trf.xlu0
      %v869 = vpop.trf.xlu0
      %870 = vxpose.xlu0.b32.start [1/16] %v773, 128
      %871 = vxpose.xlu0.b32.cont [2/16] 0.0, 128
      %872 = vxpose.xlu0.b32.cont [3/16] 0.0, 128
      %873 = vxpose.xlu0.b32.cont [4/16] 0.0, 128
      %874 = vxpose.xlu0.b32.cont [5/16] 0.0, 128
      %875 = vxpose.xlu0.b32.cont [6/16] 0.0, 128
      %876 = vxpose.xlu0.b32.cont [7/16] 0.0, 128
      %877 = vxpose.xlu0.b32.cont [8/16] 0.0, 128
      %878 = vxpose.xlu0.b32.cont [9/16] 0.0, 128
      %879 = vxpose.xlu0.b32.cont [10/16] 0.0, 128
      %880 = vxpose.xlu0.b32.cont [11/16] 0.0, 128
      %881 = vxpose.xlu0.b32.cont [12/16] 0.0, 128
      %882 = vxpose.xlu0.b32.cont [13/16] 0.0, 128
      %883 = vxpose.xlu0.b32.cont [14/16] 0.0, 128
      %884 = vxpose.xlu0.b32.cont [15/16] 0.0, 128
      %885 = vxpose.xlu0.b32.end [16/16] 0.0, 128
      %v886 = vpop.trf.xlu0
      %v887 = vpop.trf.xlu0
      %v888 = vpop.trf.xlu0
      %v889 = vpop.trf.xlu0
      %v890 = vpop.trf.xlu0
      %v891 = vpop.trf.xlu0
      %v892 = vpop.trf.xlu0
      %v893 = vpop.trf.xlu0
      %v894 = vpop.trf.xlu0
      %v895 = vpop.trf.xlu0
      %v896 = vpop.trf.xlu0
      %v897 = vpop.trf.xlu0
      %v898 = vpop.trf.xlu0
      %v899 = vpop.trf.xlu0
      %v900 = vpop.trf.xlu0
      %v901 = vpop.trf.xlu0
      %v902 = vrot.slane %v854, 4
      %v903 = vsel %vm438, %v902, %v790
      %v904 = vrot.slane %v790, 4
      %v905 = vsel %vm438, %v854, %v904
      %v907 = vunpack.c.l.s4 1983009808
      %v908 = vunpack.c.0.s8 %v907
      %v909 = vperm.slane %v903, %v908
      %v911 = vunpack.c.l.s4 1983009808
      %v912 = vunpack.c.0.s8 %v911
      %v913 = vperm.slane %v905, %v912
      %v914 = vrot.slane %v886, 4
      %v915 = vsel %vm438, %v914, %v822
      %v916 = vrot.slane %v822, 4
      %v917 = vsel %vm438, %v886, %v916
      %v919 = vunpack.c.l.s4 1983009808
      %v920 = vunpack.c.0.s8 %v919
      %v921 = vperm.slane %v915, %v920
      %v923 = vunpack.c.l.s4 1983009808
      %v924 = vunpack.c.0.s8 %v923
      %v925 = vperm.slane %v917, %v924
      %v926 = vrot.slane %v921, 4
      %v927 = vsel %vm438, %v926, %v909
      %v928 = vrot.slane %v909, 4
      %v929 = vsel %vm438, %v921, %v928
      %v931 = vunpack.c.l.s4 1934713408
      %v932 = vunpack.c.0.s8 %v931
      %v933 = vperm.slane %v927, %v932
      %v935 = vunpack.c.l.s4 1934713408
      %v936 = vunpack.c.0.s8 %v935
      %v937 = vperm.slane %v929, %v936
      %v938 = vrot.slane %v925, 4
      %v939 = vsel %vm438, %v938, %v913
      %v940 = vrot.slane %v913, 4
      %v941 = vsel %vm438, %v925, %v940
      %v943 = vunpack.c.l.s4 1934713408
      %v944 = vunpack.c.0.s8 %v943
      %v945 = vperm.slane %v939, %v944
      %v947 = vunpack.c.l.s4 1934713408
      %v948 = vunpack.c.0.s8 %v947
      %v949 = vperm.slane %v941, %v948
      %v950 = vrot.slane %v933, 4
      %v951 = vsel %vm438, 0.0, %v950
      %v952 = vrot.slane %v937, 4
      %v953 = vsel %vm438, 0.0, %v952
      %v954 = vrot.slane %v945, 4
      %v955 = vsel %vm438, 0.0, %v954
      %v956 = vrot.slane %v949, 4
      %v957 = vsel %vm438, 0.0, %v956
      %959 = vrot.lane.b32.xlu0 %v951, 8
      %v960 = vpop.permute.xlu0 %959
      %963 = vrot.lane.b32.xlu0 %v937, 16
      %v964 = vpop.permute.xlu0 %963
      %967 = vrot.lane.b32.xlu0 %v953, 24
      %v968 = vpop.permute.xlu0 %967
      %971 = vrot.lane.b32.xlu0 %v945, 32
      %v972 = vpop.permute.xlu0 %971
      %975 = vrot.lane.b32.xlu0 %v955, 40
      %v976 = vpop.permute.xlu0 %975
      %979 = vrot.lane.b32.xlu0 %v949, 48
      %v980 = vpop.permute.xlu0 %979
      %983 = vrot.lane.b32.xlu0 %v957, 56
      %v984 = vpop.permute.xlu0 %983
      %v986 = vsel %vm285, %v933, %v960
      %v987 = vsel %vm523, %v986, %v964
      %v988 = vsel %vm525, %v987, %v968
      %v989 = vsel %vm527, %v988, %v972
      %v990 = vsel %vm529, %v989, %v976
      %v991 = vsel %vm531, %v990, %v980
      %v992 = vsel %vm533, %v991, %v984
      %s993 = scalar_lea.vmem %s152, 8
      %994 = vst.msk [vmem:[%s993] sm:$0xf] %vm535, %v992
      %s995 = scalar_lea.vmem [#allocation2], 17
      %v996 = vld [vmem:[%s995] ss:$2 sm:$0xff]
      %s997 = scalar_lea.vmem [#allocation2], 49
      %v998 = vld [vmem:[%s997] ss:$2 sm:$0xff]
      %s999 = scalar_lea.vmem [#allocation2], 81
      %v1000 = vld [vmem:[%s999] ss:$2 sm:$0xff]
      %s1001 = scalar_lea.vmem [#allocation2], 113
      %v1002 = vld [vmem:[%s1001] ss:$2 sm:$0xff]
      %1003 = vxpose.xlu0.b32.start [1/16] %v996, 128
      %1004 = vxpose.xlu0.b32.cont [2/16] 0.0, 128
      %1005 = vxpose.xlu0.b32.cont [3/16] 0.0, 128
      %1006 = vxpose.xlu0.b32.cont [4/16] 0.0, 128
      %1007 = vxpose.xlu0.b32.cont [5/16] 0.0, 128
      %1008 = vxpose.xlu0.b32.cont [6/16] 0.0, 128
      %1009 = vxpose.xlu0.b32.cont [7/16] 0.0, 128
      %1010 = vxpose.xlu0.b32.cont [8/16] 0.0, 128
      %1011 = vxpose.xlu0.b32.cont [9/16] 0.0, 128
      %1012 = vxpose.xlu0.b32.cont [10/16] 0.0, 128
      %1013 = vxpose.xlu0.b32.cont [11/16] 0.0, 128
      %1014 = vxpose.xlu0.b32.cont [12/16] 0.0, 128
      %1015 = vxpose.xlu0.b32.cont [13/16] 0.0, 128
      %1016 = vxpose.xlu0.b32.cont [14/16] 0.0, 128
      %1017 = vxpose.xlu0.b32.cont [15/16] 0.0, 128
      %1018 = vxpose.xlu0.b32.end [16/16] 0.0, 128
      %v1019 = vpop.trf.xlu0
      %v1020 = vpop.trf.xlu0
      %v1021 = vpop.trf.xlu0
      %v1022 = vpop.trf.xlu0
      %v1023 = vpop.trf.xlu0
      %v1024 = vpop.trf.xlu0
      %v1025 = vpop.trf.xlu0
      %v1026 = vpop.trf.xlu0
      %v1027 = vpop.trf.xlu0
      %v1028 = vpop.trf.xlu0
      %v1029 = vpop.trf.xlu0
      %v1030 = vpop.trf.xlu0
      %v1031 = vpop.trf.xlu0
      %v1032 = vpop.trf.xlu0
      %v1033 = vpop.trf.xlu0
      %v1034 = vpop.trf.xlu0
      %1035 = vxpose.xlu0.b32.start [1/16] %v998, 128
      %1036 = vxpose.xlu0.b32.cont [2/16] 0.0, 128
      %1037 = vxpose.xlu0.b32.cont [3/16] 0.0, 128
      %1038 = vxpose.xlu0.b32.cont [4/16] 0.0, 128
      %1039 = vxpose.xlu0.b32.cont [5/16] 0.0, 128
      %1040 = vxpose.xlu0.b32.cont [6/16] 0.0, 128
      %1041 = vxpose.xlu0.b32.cont [7/16] 0.0, 128
      %1042 = vxpose.xlu0.b32.cont [8/16] 0.0, 128
      %1043 = vxpose.xlu0.b32.cont [9/16] 0.0, 128
      %1044 = vxpose.xlu0.b32.cont [10/16] 0.0, 128
      %1045 = vxpose.xlu0.b32.cont [11/16] 0.0, 128
      %1046 = vxpose.xlu0.b32.cont [12/16] 0.0, 128
      %1047 = vxpose.xlu0.b32.cont [13/16] 0.0, 128
      %1048 = vxpose.xlu0.b32.cont [14/16] 0.0, 128
      %1049 = vxpose.xlu0.b32.cont [15/16] 0.0, 128
      %1050 = vxpose.xlu0.b32.end [16/16] 0.0, 128
      %v1051 = vpop.trf.xlu0
      %v1052 = vpop.trf.xlu0
      %v1053 = vpop.trf.xlu0
      %v1054 = vpop.trf.xlu0
      %v1055 = vpop.trf.xlu0
      %v1056 = vpop.trf.xlu0
      %v1057 = vpop.trf.xlu0
      %v1058 = vpop.trf.xlu0
      %v1059 = vpop.trf.xlu0
      %v1060 = vpop.trf.xlu0
      %v1061 = vpop.trf.xlu0
      %v1062 = vpop.trf.xlu0
      %v1063 = vpop.trf.xlu0
      %v1064 = vpop.trf.xlu0
      %v1065 = vpop.trf.xlu0
      %v1066 = vpop.trf.xlu0
      %1067 = vxpose.xlu0.b32.start [1/16] %v1000, 128
      %1068 = vxpose.xlu0.b32.cont [2/16] 0.0, 128
      %1069 = vxpose.xlu0.b32.cont [3/16] 0.0, 128
      %1070 = vxpose.xlu0.b32.cont [4/16] 0.0, 128
      %1071 = vxpose.xlu0.b32.cont [5/16] 0.0, 128
      %1072 = vxpose.xlu0.b32.cont [6/16] 0.0, 128
      %1073 = vxpose.xlu0.b32.cont [7/16] 0.0, 128
      %1074 = vxpose.xlu0.b32.cont [8/16] 0.0, 128
      %1075 = vxpose.xlu0.b32.cont [9/16] 0.0, 128
      %1076 = vxpose.xlu0.b32.cont [10/16] 0.0, 128
      %1077 = vxpose.xlu0.b32.cont [11/16] 0.0, 128
      %1078 = vxpose.xlu0.b32.cont [12/16] 0.0, 128
      %1079 = vxpose.xlu0.b32.cont [13/16] 0.0, 128
      %1080 = vxpose.xlu0.b32.cont [14/16] 0.0, 128
      %1081 = vxpose.xlu0.b32.cont [15/16] 0.0, 128
      %1082 = vxpose.xlu0.b32.end [16/16] 0.0, 128
      %v1083 = vpop.trf.xlu0
      %v1084 = vpop.trf.xlu0
      %v1085 = vpop.trf.xlu0
      %v1086 = vpop.trf.xlu0
      %v1087 = vpop.trf.xlu0
      %v1088 = vpop.trf.xlu0
      %v1089 = vpop.trf.xlu0
      %v1090 = vpop.trf.xlu0
      %v1091 = vpop.trf.xlu0
      %v1092 = vpop.trf.xlu0
      %v1093 = vpop.trf.xlu0
      %v1094 = vpop.trf.xlu0
      %v1095 = vpop.trf.xlu0
      %v1096 = vpop.trf.xlu0
      %v1097 = vpop.trf.xlu0
      %v1098 = vpop.trf.xlu0
      %1099 = vxpose.xlu0.b32.start [1/16] %v1002, 128
      %1100 = vxpose.xlu0.b32.cont [2/16] 0.0, 128
      %1101 = vxpose.xlu0.b32.cont [3/16] 0.0, 128
      %1102 = vxpose.xlu0.b32.cont [4/16] 0.0, 128
      %1103 = vxpose.xlu0.b32.cont [5/16] 0.0, 128
      %1104 = vxpose.xlu0.b32.cont [6/16] 0.0, 128
      %1105 = vxpose.xlu0.b32.cont [7/16] 0.0, 128
      %1106 = vxpose.xlu0.b32.cont [8/16] 0.0, 128
      %1107 = vxpose.xlu0.b32.cont [9/16] 0.0, 128
      %1108 = vxpose.xlu0.b32.cont [10/16] 0.0, 128
      %1109 = vxpose.xlu0.b32.cont [11/16] 0.0, 128
      %1110 = vxpose.xlu0.b32.cont [12/16] 0.0, 128
      %1111 = vxpose.xlu0.b32.cont [13/16] 0.0, 128
      %1112 = vxpose.xlu0.b32.cont [14/16] 0.0, 128
      %1113 = vxpose.xlu0.b32.cont [15/16] 0.0, 128
      %1114 = vxpose.xlu0.b32.end [16/16] 0.0, 128
      %v1115 = vpop.trf.xlu0
      %v1116 = vpop.trf.xlu0
      %v1117 = vpop.trf.xlu0
      %v1118 = vpop.trf.xlu0
      %v1119 = vpop.trf.xlu0
      %v1120 = vpop.trf.xlu0
      %v1121 = vpop.trf.xlu0
      %v1122 = vpop.trf.xlu0
      %v1123 = vpop.trf.xlu0
      %v1124 = vpop.trf.xlu0
      %v1125 = vpop.trf.xlu0
      %v1126 = vpop.trf.xlu0
      %v1127 = vpop.trf.xlu0
      %v1128 = vpop.trf.xlu0
      %v1129 = vpop.trf.xlu0
      %v1130 = vpop.trf.xlu0
      %v1131 = vrot.slane %v1083, 4
      %v1132 = vsel %vm438, %v1131, %v1019
      %v1133 = vrot.slane %v1019, 4
      %v1134 = vsel %vm438, %v1083, %v1133
      %v1136 = vunpack.c.l.s4 1983009808
      %v1137 = vunpack.c.0.s8 %v1136
      %v1138 = vperm.slane %v1132, %v1137
      %v1140 = vunpack.c.l.s4 1983009808
      %v1141 = vunpack.c.0.s8 %v1140
      %v1142 = vperm.slane %v1134, %v1141
      %v1143 = vrot.slane %v1115, 4
      %v1144 = vsel %vm438, %v1143, %v1051
      %v1145 = vrot.slane %v1051, 4
      %v1146 = vsel %vm438, %v1115, %v1145
      %v1148 = vunpack.c.l.s4 1983009808
      %v1149 = vunpack.c.0.s8 %v1148
      %v1150 = vperm.slane %v1144, %v1149
      %v1152 = vunpack.c.l.s4 1983009808
      %v1153 = vunpack.c.0.s8 %v1152
      %v1154 = vperm.slane %v1146, %v1153
      %v1155 = vrot.slane %v1150, 4
      %v1156 = vsel %vm438, %v1155, %v1138
      %v1157 = vrot.slane %v1138, 4
      %v1158 = vsel %vm438, %v1150, %v1157
      %v1160 = vunpack.c.l.s4 1934713408
      %v1161 = vunpack.c.0.s8 %v1160
      %v1162 = vperm.slane %v1156, %v1161
      %v1164 = vunpack.c.l.s4 1934713408
      %v1165 = vunpack.c.0.s8 %v1164
      %v1166 = vperm.slane %v1158, %v1165
      %v1167 = vrot.slane %v1154, 4
      %v1168 = vsel %vm438, %v1167, %v1142
      %v1169 = vrot.slane %v1142, 4
      %v1170 = vsel %vm438, %v1154, %v1169
      %v1172 = vunpack.c.l.s4 1934713408
      %v1173 = vunpack.c.0.s8 %v1172
      %v1174 = vperm.slane %v1168, %v1173
      %v1176 = vunpack.c.l.s4 1934713408
      %v1177 = vunpack.c.0.s8 %v1176
      %v1178 = vperm.slane %v1170, %v1177
      %v1179 = vrot.slane %v1162, 4
      %v1180 = vsel %vm438, 0.0, %v1179
      %v1181 = vrot.slane %v1166, 4
      %v1182 = vsel %vm438, 0.0, %v1181
      %v1183 = vrot.slane %v1174, 4
      %v1184 = vsel %vm438, 0.0, %v1183
      %v1185 = vrot.slane %v1178, 4
      %v1186 = vsel %vm438, 0.0, %v1185
      %1188 = vrot.lane.b32.xlu0 %v1180, 8
      %v1189 = vpop.permute.xlu0 %1188
      %1192 = vrot.lane.b32.xlu0 %v1166, 16
      %v1193 = vpop.permute.xlu0 %1192
      %1196 = vrot.lane.b32.xlu0 %v1182, 24
      %v1197 = vpop.permute.xlu0 %1196
      %1200 = vrot.lane.b32.xlu0 %v1174, 32
      %v1201 = vpop.permute.xlu0 %1200
      %1204 = vrot.lane.b32.xlu0 %v1184, 40
      %v1205 = vpop.permute.xlu0 %1204
      %1208 = vrot.lane.b32.xlu0 %v1178, 48
      %v1209 = vpop.permute.xlu0 %1208
      %1212 = vrot.lane.b32.xlu0 %v1186, 56
      %v1213 = vpop.permute.xlu0 %1212
      %v1215 = vsel %vm285, %v1162, %v1189
      %v1216 = vsel %vm523, %v1215, %v1193
      %v1217 = vsel %vm525, %v1216, %v1197
      %v1218 = vsel %vm527, %v1217, %v1201
      %v1219 = vsel %vm529, %v1218, %v1205
      %v1220 = vsel %vm531, %v1219, %v1209
      %v1221 = vsel %vm533, %v1220, %v1213
      %s1222 = scalar_lea.vmem %s152, 12
      %1223 = vst.msk [vmem:[%s1222] sm:$0xf] %vm535, %v1221
      %p1224 = scmp.lt.s32.totalorder %s16, 1
      %s1225 = scalar_select %p1224, %s16, 1
      %p1226 = scmp.lt.s32.totalorder %s17, 0
      %s1227 = scalar_select %p1226, %s17, 0
      %s1228 = smul.addr %s1225, 4
      %s1229 = sadd.s32 %s1227, %s1228
      %s1230 = smul.addr %s1229, 4
      %s1231 = scalar_lea.vmem %s1, %s1230
      // Predicated region
      $region25: #{_contract_impl.1} parent=23 // pred_check
        %p1232 = pneg %p72
      $region26: #{_contract_impl.1} parent=23 // pred_check_branch
        %1234 = sbr.rel (%p1232) target = $region28
      $region27: #{_contract_impl.1} parent=23 // pred_region
        _
      $region28: #{_contract_impl.1} parent=23 // pred_fallthru
        _
    $region24: #{_contract_impl.1} parent=5 // pred_fallthru
      _
    %p1235 = scmp.le.s32.totalorder 2, %s7
    // Predicated region
    $region29: #{_contract_impl.1} parent=5 // pred_check
      %p1236 = pneg %p1235
    $region30: #{_contract_impl.1} parent=5 // pred_check_branch
      %1238 = sbr.rel (%p1236) target = $region32
    $region31: #{_contract_impl.1} parent=5 // pred_region
      %s1239 = ssub.s32 %s7, 2
      // Predicated region
      $region33: #{_contract_impl.1} parent=31 // pred_check
        %p1240 = pneg %p78
      $region34: #{_contract_impl.1} parent=31 // pred_check_branch
        %1242 = sbr.rel (%p1240) target = $region36
      $region35: #{_contract_impl.1} parent=31 // pred_region
        %p1243 = scmp.lt.s32.totalorder %s18, 1
        %s1244 = scalar_select %p1243, %s18, 1
        %p1245 = scmp.lt.s32.totalorder %s19, 0
        %s1246 = scalar_select %p1245, %s19, 0
        %s1247 = smul.addr %s1244, 4
        %s1248 = sadd.s32 %s1246, %s1247
        %s1249 = smul.addr %s1248, 4
        %s1250 = scalar_lea.vmem %s1, %s1249
      $region36: #{_contract_impl.1} parent=31 // pred_fallthru
        _
    $region32: #{_contract_impl.1} parent=5 // pred_fallthru
      _
  $region6: #{_contract_impl.1} parent=0 // loop_footer
    %s11 = sadd.s32 1, %s7
  $region7: #{_contract_impl.1} parent=0 // loop_footer_branch
    %6 = sbr.rel target = $region3
  $region8: #{_contract_impl.1} parent=0 // loop_exit
    _

// kernel: _contract_impl.1
$region0: #{_contract_impl.1}
  #allocation0 [shape = 'u32[]', space=smem, size = 0x4, offset = 0x4, fixed_abs, tag = 'smem constant byte address 0x4 - core index']
  #allocation1 [shape = 'u32[72,128]{1,0:T(1,128)}', space=vmem, size = 0x9000, scoped, tag = 'internal scratch']
  #allocation2 [shape = 'f32[4,32,8]{2,1,0:T(8,128)}', space=vmem, size = 0x10000, scoped, tag = 'scratch operand']
  %s0 = inlined_call_operand.vmem [shape: f32[2,4,8,32], index: 0, kind: input, shape index: {}]
  %s1 = inlined_call_operand.vmem [shape: f32[2,4,4,8,8], index: 1, kind: output, shape index: {}]
  %s2 = sld [smem:[#allocation0]]
  $region37: #{_contract_impl.1} parent=0
    _
  %s4 = ssub.s32 1, %s2
  %s5 = scalar_select 0, %s4, %s2
  loop: start=0, step=1, limit=4
  $region2: #{_contract_impl.1} parent=0 // loop_pre_header
    _
  $region3: #{_contract_impl.1} parent=0 // loop_header
    %s7 = sphi 0, %s11
    %p8 = scmp.ge.s32.totalorder %s7, 4
    %s14 = sphi 0, %s26
    %s15 = sphi 0, %s22
    %s16 = sphi 0, %s14
    %s17 = sphi 0, %s15
    %s18 = sphi 0, %s16
    %s19 = sphi 0, %s17
    %s31 = sphi 0, %s33
    %s34 = sphi 0, %s31
    %s35 = sphi 0, %s34
    %s51 = sphi 0, %s35
    %s59 = sphi 0, %s61
    %s62 = sphi 0, %s59
    %s63 = sphi 0, %s62
    %s79 = sphi 0, %s63
  $region4: #{_contract_impl.1} parent=0 // loop_header_branch
    %10 = sbr.rel (%p8) target = $region8
  $region5: #{_contract_impl.1} parent=0 // loop_body
    %s12 = ssub.s32 %s7, 1
    %s13 = ssub.s32 %s7, 2
    %s20 = sadd.s32 1, %s15
    %p21 = scmp.ge.s32.totalorder %s20, 1
    %s22 = scalar_select %p21, 0, %s20
    %s23 = sadd.s32 1, %s14
    %s24 = scalar_select %p21, %s23, %s14
    %p25 = scmp.ge.s32.totalorder %s24, 2
    %s26 = scalar_select %p25, 0, %s24
    %s27 = ssub.s32 %s14, %s26
    %s28 = ssub.s32 %s15, %s22
    %s29 = sor.u32 %s27, %s28
    %p30 = scmp.eq.s32.totalorder %s29, 0
    %s32 = sadd.s32 %s31, 1
    %s33 = scalar_select %p30, %s31, %s32
    %p36 = pneg %p30
    %p37 = scmp.eq.s32.totalorder %s7, 1
    %p38 = por %p36, %p37
    %p39 = scmp.ne.s32.totalorder %s31, %s34
    %p40 = scmp.eq.s32.totalorder %s7, 0
    %p41 = por %p39, %p40
    %p42 = scmp.ne.s32.totalorder %s31, %s34
    %p43 = scmp.eq.s32.totalorder %s12, 1
    %p44 = por %p42, %p43
    %p45 = scmp.ne.s32.totalorder %s34, %s35
    %p46 = scmp.eq.s32.totalorder %s12, 0
    %p47 = por %p45, %p46
    %p48 = scmp.ne.s32.totalorder %s34, %s35
    %p49 = scmp.eq.s32.totalorder %s13, 1
    %p50 = por %p48, %p49
    %p52 = scmp.ne.s32.totalorder %s35, %s51
    %p53 = scmp.eq.s32.totalorder %s13, 0
    %p54 = por %p52, %p53
    %s55 = ssub.s32 %s14, %s26
    %s56 = ssub.s32 %s15, %s22
    %s57 = sor.u32 %s55, %s56
    %p58 = scmp.eq.s32.totalorder %s57, 0
    %s60 = sadd.s32 %s59, 1
    %s61 = scalar_select %p58, %s59, %s60
    %p64 = pneg %p58
    %p65 = scmp.eq.s32.totalorder %s7, 1
    %p66 = por %p64, %p65
    %p67 = scmp.ne.s32.totalorder %s59, %s62
    %p68 = scmp.eq.s32.totalorder %s7, 0
    %p69 = por %p67, %p68
    %p70 = scmp.ne.s32.totalorder %s59, %s62
    %p71 = scmp.eq.s32.totalorder %s12, 1
    %p72 = por %p70, %p71
    %p73 = scmp.ne.s32.totalorder %s62, %s63
    %p74 = scmp.eq.s32.totalorder %s12, 0
    %p75 = por %p73, %p74
    %p76 = scmp.ne.s32.totalorder %s62, %s63
    %p77 = scmp.eq.s32.totalorder %s13, 1
    %p78 = por %p76, %p77
    %p80 = scmp.ne.s32.totalorder %s63, %s79
    %p81 = scmp.eq.s32.totalorder %s13, 0
    %p82 = por %p80, %p81
    %p83 = scmp.le.s32.totalorder 1, %s7
    %p84 = scmp.lt.s32.totalorder %s7, 3
    %p85 = pnand %p83, %p84
    %p86 = pneg %p85
    // Predicated region
    $region9: #{_contract_impl.1} parent=5 // pred_check
      _
    $region10: #{_contract_impl.1} parent=5 // pred_check_branch
      %88 = sbr.rel (%p85) target = $region12
    $region11: #{_contract_impl.1} parent=5 // pred_region
      %s89 = ssub.s32 %s7, 1
    $region12: #{_contract_impl.1} parent=5 // pred_fallthru
      _
    %p90 = scmp.lt.s32.totalorder %s7, 2
    // Predicated region
    $region13: #{_contract_impl.1} parent=5 // pred_check
      %p91 = pneg %p90
    $region14: #{_contract_impl.1} parent=5 // pred_check_branch
      %93 = sbr.rel (%p91) target = $region16
    $region15: #{_contract_impl.1} parent=5 // pred_region
      // Predicated region
      $region17: #{_contract_impl.1} parent=15 // pred_check
        %p94 = pneg %p41
      $region18: #{_contract_impl.1} parent=15 // pred_check_branch
        %96 = sbr.rel (%p94) target = $region20
      $region19: #{_contract_impl.1} parent=15 // pred_region
        %s97 = smul.u32 4, %s15
        %p98 = scmp.lt.s32.totalorder %s14, 1
        %s99 = scalar_select %p98, %s14, 1
        %p100 = scmp.lt.s32.totalorder %s97, 3
        %s101 = scalar_select %p100, %s97, 3
        %s102 = smul.addr %s99, 4
        %s103 = sadd.s32 %s101, %s102
        %s104 = smul.addr %s103, 8
        %s105 = scalar_lea.vmem %s0, %s104
        %s106 = smul.u32 4, %s15
      $region20: #{_contract_impl.1} parent=15 // pred_fallthru
        _
    $region16: #{_contract_impl.1} parent=5 // pred_fallthru
      _
    %p107 = scmp.le.s32.totalorder 1, %s7
    %p108 = scmp.lt.s32.totalorder %s7, 3
    %p109 = pnand %p107, %p108
    %p110 = pneg %p109
    // Predicated region
    $region21: #{_contract_impl.1} parent=5 // pred_check
      _
    $region22: #{_contract_impl.1} parent=5 // pred_check_branch
      %112 = sbr.rel (%p109) target = $region24
    $region23: #{_contract_impl.1} parent=5 // pred_region
      %s113 = ssub.s32 %s7, 1
      %s114 = smul.u32 4, %s17
      %p115 = scmp.lt.s32.totalorder %s16, 1
      %s116 = scalar_select %p115, %s16, 1
      %p117 = scmp.lt.s32.totalorder %s114, 3
      %s118 = scalar_select %p117, %s114, 3
      %s119 = smul.addr %s116, 4
      %s120 = sadd.s32 %s118, %s119
      %s121 = smul.addr %s120, 8
      %s122 = scalar_lea.vmem %s0, %s121
      %p123 = pneg %p47
      %p124 = pneg %p44
      %p125 = pneg %p75
      %p126 = pneg %p72
      %s127 = smul.u32 4, %s17
      %p128 = scmp.lt.s32.totalorder %s16, 1
      %s129 = scalar_select %p128, %s16, 1
      %p130 = scmp.lt.s32.totalorder %s127, 3
      %s131 = scalar_select %p130, %s127, 3
      %s132 = smul.addr %s129, 16
      %s133 = sadd.s32 %s131, %s132
      %s134 = smul.addr %s133, 8
      %s135 = scalar_lea.vmem %s1, %s134
      %s136 = smul.u32 4, %s17
      %p137 = scmp.lt.s32.totalorder %s16, 1
      %s138 = scalar_select %p137, %s16, 1
      %p139 = scmp.lt.s32.totalorder %s136, 3
      %s140 = scalar_select %p139, %s136, 3
      %s141 = smul.addr %s138, 4
      %s142 = sadd.s32 %s140, %s141
      %s143 = smul.addr %s142, 8
      %s144 = scalar_lea.vmem %s0, %s143
      %s145 = smul.u32 4, %s17
      %s146 = smul.u32 4, %s17
      %p147 = scmp.lt.s32.totalorder %s16, 1
      %s148 = scalar_select %p147, %s16, 1
      %p149 = scmp.lt.s32.totalorder %s146, 3
      %s150 = scalar_select %p149, %s146, 3
      %s151 = smul.addr %s148, 16
      %s152 = sadd.s32 %s150, %s151
      %s153 = smul.addr %s152, 8
      %s154 = scalar_lea.vmem %s1, %s153
      %s155 = smul.u32 4, %s17
      %v156 = vld [vmem:[%s144] sm:$0xff]
      %v157 = vld [vmem:[%s144 + $0x8] sm:$0xff]
      %v158 = vld [vmem:[%s144 + $0x10] sm:$0xff]
      %v159 = vld [vmem:[%s144 + $0x18] sm:$0xff]
      %160 = vxpose.xlu0.b32.start [1/16] %v156, 128
      %161 = vxpose.xlu0.b32.cont [2/16] 0.0, 128
      %162 = vxpose.xlu0.b32.cont [3/16] 0.0, 128
      %163 = vxpose.xlu0.b32.cont [4/16] 0.0, 128
      %164 = vxpose.xlu0.b32.cont [5/16] 0.0, 128
      %165 = vxpose.xlu0.b32.cont [6/16] 0.0, 128
      %166 = vxpose.xlu0.b32.cont [7/16] 0.0, 128
      %167 = vxpose.xlu0.b32.cont [8/16] 0.0, 128
      %168 = vxpose.xlu0.b32.cont [9/16] 0.0, 128
      %169 = vxpose.xlu0.b32.cont [10/16] 0.0, 128
      %170 = vxpose.xlu0.b32.cont [11/16] 0.0, 128
      %171 = vxpose.xlu0.b32.cont [12/16] 0.0, 128
      %172 = vxpose.xlu0.b32.cont [13/16] 0.0, 128
      %173 = vxpose.xlu0.b32.cont [14/16] 0.0, 128
      %174 = vxpose.xlu0.b32.cont [15/16] 0.0, 128
      %175 = vxpose.xlu0.b32.end [16/16] 0.0, 128
      %v176 = vpop.trf.xlu0
      %v177 = vpop.trf.xlu0
      %v178 = vpop.trf.xlu0
      %v179 = vpop.trf.xlu0
      %v180 = vpop.trf.xlu0
      %v181 = vpop.trf.xlu0
      %v182 = vpop.trf.xlu0
      %v183 = vpop.trf.xlu0
      %v184 = vpop.trf.xlu0
      %v185 = vpop.trf.xlu0
      %v186 = vpop.trf.xlu0
      %v187 = vpop.trf.xlu0
      %v188 = vpop.trf.xlu0
      %v189 = vpop.trf.xlu0
      %v190 = vpop.trf.xlu0
      %v191 = vpop.trf.xlu0
      %192 = vxpose.xlu0.b32.start [1/16] %v157, 128
      %193 = vxpose.xlu0.b32.cont [2/16] 0.0, 128
      %194 = vxpose.xlu0.b32.cont [3/16] 0.0, 128
      %195 = vxpose.xlu0.b32.cont [4/16] 0.0, 128
      %196 = vxpose.xlu0.b32.cont [5/16] 0.0, 128
      %197 = vxpose.xlu0.b32.cont [6/16] 0.0, 128
      %198 = vxpose.xlu0.b32.cont [7/16] 0.0, 128
      %199 = vxpose.xlu0.b32.cont [8/16] 0.0, 128
      %200 = vxpose.xlu0.b32.cont [9/16] 0.0, 128
      %201 = vxpose.xlu0.b32.cont [10/16] 0.0, 128
      %202 = vxpose.xlu0.b32.cont [11/16] 0.0, 128
      %203 = vxpose.xlu0.b32.cont [12/16] 0.0, 128
      %204 = vxpose.xlu0.b32.cont [13/16] 0.0, 128
      %205 = vxpose.xlu0.b32.cont [14/16] 0.0, 128
      %206 = vxpose.xlu0.b32.cont [15/16] 0.0, 128
      %207 = vxpose.xlu0.b32.end [16/16] 0.0, 128
      %v208 = vpop.trf.xlu0
      %v209 = vpop.trf.xlu0
      %v210 = vpop.trf.xlu0
      %v211 = vpop.trf.xlu0
      %v212 = vpop.trf.xlu0
      %v213 = vpop.trf.xlu0
      %v214 = vpop.trf.xlu0
      %v215 = vpop.trf.xlu0
      %v216 = vpop.trf.xlu0
      %v217 = vpop.trf.xlu0
      %v218 = vpop.trf.xlu0
      %v219 = vpop.trf.xlu0
      %v220 = vpop.trf.xlu0
      %v221 = vpop.trf.xlu0
      %v222 = vpop.trf.xlu0
      %v223 = vpop.trf.xlu0
      %224 = vxpose.xlu0.b32.start [1/16] %v158, 128
      %225 = vxpose.xlu0.b32.cont [2/16] 0.0, 128
      %226 = vxpose.xlu0.b32.cont [3/16] 0.0, 128
      %227 = vxpose.xlu0.b32.cont [4/16] 0.0, 128
      %228 = vxpose.xlu0.b32.cont [5/16] 0.0, 128
      %229 = vxpose.xlu0.b32.cont [6/16] 0.0, 128
      %230 = vxpose.xlu0.b32.cont [7/16] 0.0, 128
      %231 = vxpose.xlu0.b32.cont [8/16] 0.0, 128
      %232 = vxpose.xlu0.b32.cont [9/16] 0.0, 128
      %233 = vxpose.xlu0.b32.cont [10/16] 0.0, 128
      %234 = vxpose.xlu0.b32.cont [11/16] 0.0, 128
      %235 = vxpose.xlu0.b32.cont [12/16] 0.0, 128
      %236 = vxpose.xlu0.b32.cont [13/16] 0.0, 128
      %237 = vxpose.xlu0.b32.cont [14/16] 0.0, 128
      %238 = vxpose.xlu0.b32.cont [15/16] 0.0, 128
      %239 = vxpose.xlu0.b32.end [16/16] 0.0, 128
      %v240 = vpop.trf.xlu0
      %v241 = vpop.trf.xlu0
      %v242 = vpop.trf.xlu0
      %v243 = vpop.trf.xlu0
      %v244 = vpop.trf.xlu0
      %v245 = vpop.trf.xlu0
      %v246 = vpop.trf.xlu0
      %v247 = vpop.trf.xlu0
      %v248 = vpop.trf.xlu0
      %v249 = vpop.trf.xlu0
      %v250 = vpop.trf.xlu0
      %v251 = vpop.trf.xlu0
      %v252 = vpop.trf.xlu0
      %v253 = vpop.trf.xlu0
      %v254 = vpop.trf.xlu0
      %v255 = vpop.trf.xlu0
      %256 = vxpose.xlu0.b32.start [1/16] %v159, 128
      %257 = vxpose.xlu0.b32.cont [2/16] 0.0, 128
      %258 = vxpose.xlu0.b32.cont [3/16] 0.0, 128
      %259 = vxpose.xlu0.b32.cont [4/16] 0.0, 128
      %260 = vxpose.xlu0.b32.cont [5/16] 0.0, 128
      %261 = vxpose.xlu0.b32.cont [6/16] 0.0, 128
      %262 = vxpose.xlu0.b32.cont [7/16] 0.0, 128
      %263 = vxpose.xlu0.b32.cont [8/16] 0.0, 128
      %264 = vxpose.xlu0.b32.cont [9/16] 0.0, 128
      %265 = vxpose.xlu0.b32.cont [10/16] 0.0, 128
      %266 = vxpose.xlu0.b32.cont [11/16] 0.0, 128
      %267 = vxpose.xlu0.b32.cont [12/16] 0.0, 128
      %268 = vxpose.xlu0.b32.cont [13/16] 0.0, 128
      %269 = vxpose.xlu0.b32.cont [14/16] 0.0, 128
      %270 = vxpose.xlu0.b32.cont [15/16] 0.0, 128
      %271 = vxpose.xlu0.b32.end [16/16] 0.0, 128
      %v272 = vpop.trf.xlu0
      %v273 = vpop.trf.xlu0
      %v274 = vpop.trf.xlu0
      %v275 = vpop.trf.xlu0
      %v276 = vpop.trf.xlu0
      %v277 = vpop.trf.xlu0
      %v278 = vpop.trf.xlu0
      %v279 = vpop.trf.xlu0
      %v280 = vpop.trf.xlu0
      %v281 = vpop.trf.xlu0
      %v282 = vpop.trf.xlu0
      %v283 = vpop.trf.xlu0
      %v284 = vpop.trf.xlu0
      %v285 = vpop.trf.xlu0
      %v286 = vpop.trf.xlu0
      %v287 = vpop.trf.xlu0
      %vm288 = vcmask 64512
      %289 = vst.msk [vmem:[#allocation2] sm:$0xff] %vm288, %v176
      %290 = vst.msk [vmem:[#allocation2 + $0x8] sm:$0xff] %vm288, %v177
      %291 = vst.msk [vmem:[#allocation2 + $0x10] sm:$0xff] %vm288, %v178
      %292 = vst.msk [vmem:[#allocation2 + $0x18] sm:$0xff] %vm288, %v179
      %293 = vst.msk [vmem:[#allocation2 + $0x20] sm:$0xff] %vm288, %v208
      %294 = vst.msk [vmem:[#allocation2 + $0x28] sm:$0xff] %vm288, %v209
      %295 = vst.msk [vmem:[#allocation2 + $0x30] sm:$0xff] %vm288, %v210
      %296 = vst.msk [vmem:[#allocation2 + $0x38] sm:$0xff] %vm288, %v211
      %297 = vst.msk [vmem:[#allocation2 + $0x40] sm:$0xff] %vm288, %v240
      %298 = vst.msk [vmem:[#allocation2 + $0x48] sm:$0xff] %vm288, %v241
      %299 = vst.msk [vmem:[#allocation2 + $0x50] sm:$0xff] %vm288, %v242
      %300 = vst.msk [vmem:[#allocation2 + $0x58] sm:$0xff] %vm288, %v243
      %301 = vst.msk [vmem:[#allocation2 + $0x60] sm:$0xff] %vm288, %v272
      %302 = vst.msk [vmem:[#allocation2 + $0x68] sm:$0xff] %vm288, %v273
      %303 = vst.msk [vmem:[#allocation2 + $0x70] sm:$0xff] %vm288, %v274
      %304 = vst.msk [vmem:[#allocation2 + $0x78] sm:$0xff] %vm288, %v275
      %v305 = vld [vmem:[#allocation2] ss:$2 sm:$0xff]
      %s306 = scalar_lea.vmem [#allocation2], 32
      %v307 = vld [vmem:[%s306] ss:$2 sm:$0xff]
      %s308 = scalar_lea.vmem [#allocation2], 64
      %v309 = vld [vmem:[%s308] ss:$2 sm:$0xff]
      %s310 = scalar_lea.vmem [#allocation2], 96
      %v311 = vld [vmem:[%s310] ss:$2 sm:$0xff]
      %312 = vxpose.xlu0.b32.start [1/16] %v305, 128
      %313 = vxpose.xlu0.b32.cont [2/16] 0.0, 128
      %314 = vxpose.xlu0.b32.cont [3/16] 0.0, 128
      %315 = vxpose.xlu0.b32.cont [4/16] 0.0, 128
      %316 = vxpose.xlu0.b32.cont [5/16] 0.0, 128
      %317 = vxpose.xlu0.b32.cont [6/16] 0.0, 128
      %318 = vxpose.xlu0.b32.cont [7/16] 0.0, 128
      %319 = vxpose.xlu0.b32.cont [8/16] 0.0, 128
      %320 = vxpose.xlu0.b32.cont [9/16] 0.0, 128
      %321 = vxpose.xlu0.b32.cont [10/16] 0.0, 128
      %322 = vxpose.xlu0.b32.cont [11/16] 0.0, 128
      %323 = vxpose.xlu0.b32.cont [12/16] 0.0, 128
      %324 = vxpose.xlu0.b32.cont [13/16] 0.0, 128
      %325 = vxpose.xlu0.b32.cont [14/16] 0.0, 128
      %326 = vxpose.xlu0.b32.cont [15/16] 0.0, 128
      %327 = vxpose.xlu0.b32.end [16/16] 0.0, 128
      %v328 = vpop.trf.xlu0
      %v329 = vpop.trf.xlu0
      %v330 = vpop.trf.xlu0
      %v331 = vpop.trf.xlu0
      %v332 = vpop.trf.xlu0
      %v333 = vpop.trf.xlu0
      %v334 = vpop.trf.xlu0
      %v335 = vpop.trf.xlu0
      %v336 = vpop.trf.xlu0
      %v337 = vpop.trf.xlu0
      %v338 = vpop.trf.xlu0
      %v339 = vpop.trf.xlu0
      %v340 = vpop.trf.xlu0
      %v341 = vpop.trf.xlu0
      %v342 = vpop.trf.xlu0
      %v343 = vpop.trf.xlu0
      %344 = vxpose.xlu0.b32.start [1/16] %v307, 128
      %345 = vxpose.xlu0.b32.cont [2/16] 0.0, 128
      %346 = vxpose.xlu0.b32.cont [3/16] 0.0, 128
      %347 = vxpose.xlu0.b32.cont [4/16] 0.0, 128
      %348 = vxpose.xlu0.b32.cont [5/16] 0.0, 128
      %349 = vxpose.xlu0.b32.cont [6/16] 0.0, 128
      %350 = vxpose.xlu0.b32.cont [7/16] 0.0, 128
      %351 = vxpose.xlu0.b32.cont [8/16] 0.0, 128
      %352 = vxpose.xlu0.b32.cont [9/16] 0.0, 128
      %353 = vxpose.xlu0.b32.cont [10/16] 0.0, 128
      %354 = vxpose.xlu0.b32.cont [11/16] 0.0, 128
      %355 = vxpose.xlu0.b32.cont [12/16] 0.0, 128
      %356 = vxpose.xlu0.b32.cont [13/16] 0.0, 128
      %357 = vxpose.xlu0.b32.cont [14/16] 0.0, 128
      %358 = vxpose.xlu0.b32.cont [15/16] 0.0, 128
      %359 = vxpose.xlu0.b32.end [16/16] 0.0, 128
      %v360 = vpop.trf.xlu0
      %v361 = vpop.trf.xlu0
      %v362 = vpop.trf.xlu0
      %v363 = vpop.trf.xlu0
      %v364 = vpop.trf.xlu0
      %v365 = vpop.trf.xlu0
      %v366 = vpop.trf.xlu0
      %v367 = vpop.trf.xlu0
      %v368 = vpop.trf.xlu0
      %v369 = vpop.trf.xlu0
      %v370 = vpop.trf.xlu0
      %v371 = vpop.trf.xlu0
      %v372 = vpop.trf.xlu0
      %v373 = vpop.trf.xlu0
      %v374 = vpop.trf.xlu0
      %v375 = vpop.trf.xlu0
      %376 = vxpose.xlu0.b32.start [1/16] %v309, 128
      %377 = vxpose.xlu0.b32.cont [2/16] 0.0, 128
      %378 = vxpose.xlu0.b32.cont [3/16] 0.0, 128
      %379 = vxpose.xlu0.b32.cont [4/16] 0.0, 128
      %380 = vxpose.xlu0.b32.cont [5/16] 0.0, 128
      %381 = vxpose.xlu0.b32.cont [6/16] 0.0, 128
      %382 = vxpose.xlu0.b32.cont [7/16] 0.0, 128
      %383 = vxpose.xlu0.b32.cont [8/16] 0.0, 128
      %384 = vxpose.xlu0.b32.cont [9/16] 0.0, 128
      %385 = vxpose.xlu0.b32.cont [10/16] 0.0, 128
      %386 = vxpose.xlu0.b32.cont [11/16] 0.0, 128
      %387 = vxpose.xlu0.b32.cont [12/16] 0.0, 128
      %388 = vxpose.xlu0.b32.cont [13/16] 0.0, 128
      %389 = vxpose.xlu0.b32.cont [14/16] 0.0, 128
      %390 = vxpose.xlu0.b32.cont [15/16] 0.0, 128
      %391 = vxpose.xlu0.b32.end [16/16] 0.0, 128
      %v392 = vpop.trf.xlu0
      %v393 = vpop.trf.xlu0
      %v394 = vpop.trf.xlu0
      %v395 = vpop.trf.xlu0
      %v396 = vpop.trf.xlu0
      %v397 = vpop.trf.xlu0
      %v398 = vpop.trf.xlu0
      %v399 = vpop.trf.xlu0
      %v400 = vpop.trf.xlu0
      %v401 = vpop.trf.xlu0
      %v402 = vpop.trf.xlu0
      %v403 = vpop.trf.xlu0
      %v404 = vpop.trf.xlu0
      %v405 = vpop.trf.xlu0
      %v406 = vpop.trf.xlu0
      %v407 = vpop.trf.xlu0
      %408 = vxpose.xlu0.b32.start [1/16] %v311, 128
      %409 = vxpose.xlu0.b32.cont [2/16] 0.0, 128
      %410 = vxpose.xlu0.b32.cont [3/16] 0.0, 128
      %411 = vxpose.xlu0.b32.cont [4/16] 0.0, 128
      %412 = vxpose.xlu0.b32.cont [5/16] 0.0, 128
      %413 = vxpose.xlu0.b32.cont [6/16] 0.0, 128
      %414 = vxpose.xlu0.b32.cont [7/16] 0.0, 128
      %415 = vxpose.xlu0.b32.cont [8/16] 0.0, 128
      %416 = vxpose.xlu0.b32.cont [9/16] 0.0, 128
      %417 = vxpose.xlu0.b32.cont [10/16] 0.0, 128
      %418 = vxpose.xlu0.b32.cont [11/16] 0.0, 128
      %419 = vxpose.xlu0.b32.cont [12/16] 0.0, 128
      %420 = vxpose.xlu0.b32.cont [13/16] 0.0, 128
      %421 = vxpose.xlu0.b32.cont [14/16] 0.0, 128
      %422 = vxpose.xlu0.b32.cont [15/16] 0.0, 128
      %423 = vxpose.xlu0.b32.end [16/16] 0.0, 128
      %v424 = vpop.trf.xlu0
      %v425 = vpop.trf.xlu0
      %v426 = vpop.trf.xlu0
      %v427 = vpop.trf.xlu0
      %v428 = vpop.trf.xlu0
      %v429 = vpop.trf.xlu0
      %v430 = vpop.trf.xlu0
      %v431 = vpop.trf.xlu0
      %v432 = vpop.trf.xlu0
      %v433 = vpop.trf.xlu0
      %v434 = vpop.trf.xlu0
      %v435 = vpop.trf.xlu0
      %v436 = vpop.trf.xlu0
      %v437 = vpop.trf.xlu0
      %v438 = vpop.trf.xlu0
      %v439 = vpop.trf.xlu0
      %440 = vst.msk [vmem:[%s154] sm:$0xff] %vm288, %v328
      %441 = vst.msk [vmem:[%s154 + $0x8] sm:$0xff] %vm288, %v360
      %442 = vst.msk [vmem:[%s154 + $0x10] sm:$0xff] %vm288, %v392
      %443 = vst.msk [vmem:[%s154 + $0x18] sm:$0xff] %vm288, %v424
      %s444 = scalar_lea.vmem [#allocation2], 1
      %v445 = vld [vmem:[%s444] ss:$2 sm:$0xff]
      %s446 = scalar_lea.vmem [#allocation2], 33
      %v447 = vld [vmem:[%s446] ss:$2 sm:$0xff]
      %s448 = scalar_lea.vmem [#allocation2], 65
      %v449 = vld [vmem:[%s448] ss:$2 sm:$0xff]
      %s450 = scalar_lea.vmem [#allocation2], 97
      %v451 = vld [vmem:[%s450] ss:$2 sm:$0xff]
      %452 = vxpose.xlu0.b32.start [1/16] %v445, 128
      %453 = vxpose.xlu0.b32.cont [2/16] 0.0, 128
      %454 = vxpose.xlu0.b32.cont [3/16] 0.0, 128
      %455 = vxpose.xlu0.b32.cont [4/16] 0.0, 128
      %456 = vxpose.xlu0.b32.cont [5/16] 0.0, 128
      %457 = vxpose.xlu0.b32.cont [6/16] 0.0, 128
      %458 = vxpose.xlu0.b32.cont [7/16] 0.0, 128
      %459 = vxpose.xlu0.b32.cont [8/16] 0.0, 128
      %460 = vxpose.xlu0.b32.cont [9/16] 0.0, 128
      %461 = vxpose.xlu0.b32.cont [10/16] 0.0, 128
      %462 = vxpose.xlu0.b32.cont [11/16] 0.0, 128
      %463 = vxpose.xlu0.b32.cont [12/16] 0.0, 128
      %464 = vxpose.xlu0.b32.cont [13/16] 0.0, 128
      %465 = vxpose.xlu0.b32.cont [14/16] 0.0, 128
      %466 = vxpose.xlu0.b32.cont [15/16] 0.0, 128
      %467 = vxpose.xlu0.b32.end [16/16] 0.0, 128
      %v468 = vpop.trf.xlu0
      %v469 = vpop.trf.xlu0
      %v470 = vpop.trf.xlu0
      %v471 = vpop.trf.xlu0
      %v472 = vpop.trf.xlu0
      %v473 = vpop.trf.xlu0
      %v474 = vpop.trf.xlu0
      %v475 = vpop.trf.xlu0
      %v476 = vpop.trf.xlu0
      %v477 = vpop.trf.xlu0
      %v478 = vpop.trf.xlu0
      %v479 = vpop.trf.xlu0
      %v480 = vpop.trf.xlu0
      %v481 = vpop.trf.xlu0
      %v482 = vpop.trf.xlu0
      %v483 = vpop.trf.xlu0
      %484 = vxpose.xlu0.b32.start [1/16] %v447, 128
      %485 = vxpose.xlu0.b32.cont [2/16] 0.0, 128
      %486 = vxpose.xlu0.b32.cont [3/16] 0.0, 128
      %487 = vxpose.xlu0.b32.cont [4/16] 0.0, 128
      %488 = vxpose.xlu0.b32.cont [5/16] 0.0, 128
      %489 = vxpose.xlu0.b32.cont [6/16] 0.0, 128
      %490 = vxpose.xlu0.b32.cont [7/16] 0.0, 128
      %491 = vxpose.xlu0.b32.cont [8/16] 0.0, 128
      %492 = vxpose.xlu0.b32.cont [9/16] 0.0, 128
      %493 = vxpose.xlu0.b32.cont [10/16] 0.0, 128
      %494 = vxpose.xlu0.b32.cont [11/16] 0.0, 128
      %495 = vxpose.xlu0.b32.cont [12/16] 0.0, 128
      %496 = vxpose.xlu0.b32.cont [13/16] 0.0, 128
      %497 = vxpose.xlu0.b32.cont [14/16] 0.0, 128
      %498 = vxpose.xlu0.b32.cont [15/16] 0.0, 128
      %499 = vxpose.xlu0.b32.end [16/16] 0.0, 128
      %v500 = vpop.trf.xlu0
      %v501 = vpop.trf.xlu0
      %v502 = vpop.trf.xlu0
      %v503 = vpop.trf.xlu0
      %v504 = vpop.trf.xlu0
      %v505 = vpop.trf.xlu0
      %v506 = vpop.trf.xlu0
      %v507 = vpop.trf.xlu0
      %v508 = vpop.trf.xlu0
      %v509 = vpop.trf.xlu0
      %v510 = vpop.trf.xlu0
      %v511 = vpop.trf.xlu0
      %v512 = vpop.trf.xlu0
      %v513 = vpop.trf.xlu0
      %v514 = vpop.trf.xlu0
      %v515 = vpop.trf.xlu0
      %516 = vxpose.xlu0.b32.start [1/16] %v449, 128
      %517 = vxpose.xlu0.b32.cont [2/16] 0.0, 128
      %518 = vxpose.xlu0.b32.cont [3/16] 0.0, 128
      %519 = vxpose.xlu0.b32.cont [4/16] 0.0, 128
      %520 = vxpose.xlu0.b32.cont [5/16] 0.0, 128
      %521 = vxpose.xlu0.b32.cont [6/16] 0.0, 128
      %522 = vxpose.xlu0.b32.cont [7/16] 0.0, 128
      %523 = vxpose.xlu0.b32.cont [8/16] 0.0, 128
      %524 = vxpose.xlu0.b32.cont [9/16] 0.0, 128
      %525 = vxpose.xlu0.b32.cont [10/16] 0.0, 128
      %526 = vxpose.xlu0.b32.cont [11/16] 0.0, 128
      %527 = vxpose.xlu0.b32.cont [12/16] 0.0, 128
      %528 = vxpose.xlu0.b32.cont [13/16] 0.0, 128
      %529 = vxpose.xlu0.b32.cont [14/16] 0.0, 128
      %530 = vxpose.xlu0.b32.cont [15/16] 0.0, 128
      %531 = vxpose.xlu0.b32.end [16/16] 0.0, 128
      %v532 = vpop.trf.xlu0
      %v533 = vpop.trf.xlu0
      %v534 = vpop.trf.xlu0
      %v535 = vpop.trf.xlu0
      %v536 = vpop.trf.xlu0
      %v537 = vpop.trf.xlu0
      %v538 = vpop.trf.xlu0
      %v539 = vpop.trf.xlu0
      %v540 = vpop.trf.xlu0
      %v541 = vpop.trf.xlu0
      %v542 = vpop.trf.xlu0
      %v543 = vpop.trf.xlu0
      %v544 = vpop.trf.xlu0
      %v545 = vpop.trf.xlu0
      %v546 = vpop.trf.xlu0
      %v547 = vpop.trf.xlu0
      %548 = vxpose.xlu0.b32.start [1/16] %v451, 128
      %549 = vxpose.xlu0.b32.cont [2/16] 0.0, 128
      %550 = vxpose.xlu0.b32.cont [3/16] 0.0, 128
      %551 = vxpose.xlu0.b32.cont [4/16] 0.0, 128
      %552 = vxpose.xlu0.b32.cont [5/16] 0.0, 128
      %553 = vxpose.xlu0.b32.cont [6/16] 0.0, 128
      %554 = vxpose.xlu0.b32.cont [7/16] 0.0, 128
      %555 = vxpose.xlu0.b32.cont [8/16] 0.0, 128
      %556 = vxpose.xlu0.b32.cont [9/16] 0.0, 128
      %557 = vxpose.xlu0.b32.cont [10/16] 0.0, 128
      %558 = vxpose.xlu0.b32.cont [11/16] 0.0, 128
      %559 = vxpose.xlu0.b32.cont [12/16] 0.0, 128
      %560 = vxpose.xlu0.b32.cont [13/16] 0.0, 128
      %561 = vxpose.xlu0.b32.cont [14/16] 0.0, 128
      %562 = vxpose.xlu0.b32.cont [15/16] 0.0, 128
      %563 = vxpose.xlu0.b32.end [16/16] 0.0, 128
      %v564 = vpop.trf.xlu0
      %v565 = vpop.trf.xlu0
      %v566 = vpop.trf.xlu0
      %v567 = vpop.trf.xlu0
      %v568 = vpop.trf.xlu0
      %v569 = vpop.trf.xlu0
      %v570 = vpop.trf.xlu0
      %v571 = vpop.trf.xlu0
      %v572 = vpop.trf.xlu0
      %v573 = vpop.trf.xlu0
      %v574 = vpop.trf.xlu0
      %v575 = vpop.trf.xlu0
      %v576 = vpop.trf.xlu0
      %v577 = vpop.trf.xlu0
      %v578 = vpop.trf.xlu0
      %v579 = vpop.trf.xlu0
      %s580 = scalar_lea.vmem %s154, 32
      %581 = vst.msk [vmem:[%s580] sm:$0xff] %vm288, %v468
      %582 = vst.msk [vmem:[%s580 + $0x8] sm:$0xff] %vm288, %v500
      %583 = vst.msk [vmem:[%s580 + $0x10] sm:$0xff] %vm288, %v532
      %584 = vst.msk [vmem:[%s580 + $0x18] sm:$0xff] %vm288, %v564
      %s585 = scalar_lea.vmem [#allocation2], 16
      %v586 = vld [vmem:[%s585] ss:$2 sm:$0xff]
      %s587 = scalar_lea.vmem [#allocation2], 48
      %v588 = vld [vmem:[%s587] ss:$2 sm:$0xff]
      %s589 = scalar_lea.vmem [#allocation2], 80
      %v590 = vld [vmem:[%s589] ss:$2 sm:$0xff]
      %s591 = scalar_lea.vmem [#allocation2], 112
      %v592 = vld [vmem:[%s591] ss:$2 sm:$0xff]
      %593 = vxpose.xlu0.b32.start [1/16] %v586, 128
      %594 = vxpose.xlu0.b32.cont [2/16] 0.0, 128
      %595 = vxpose.xlu0.b32.cont [3/16] 0.0, 128
      %596 = vxpose.xlu0.b32.cont [4/16] 0.0, 128
      %597 = vxpose.xlu0.b32.cont [5/16] 0.0, 128
      %598 = vxpose.xlu0.b32.cont [6/16] 0.0, 128
      %599 = vxpose.xlu0.b32.cont [7/16] 0.0, 128
      %600 = vxpose.xlu0.b32.cont [8/16] 0.0, 128
      %601 = vxpose.xlu0.b32.cont [9/16] 0.0, 128
      %602 = vxpose.xlu0.b32.cont [10/16] 0.0, 128
      %603 = vxpose.xlu0.b32.cont [11/16] 0.0, 128
      %604 = vxpose.xlu0.b32.cont [12/16] 0.0, 128
      %605 = vxpose.xlu0.b32.cont [13/16] 0.0, 128
      %606 = vxpose.xlu0.b32.cont [14/16] 0.0, 128
      %607 = vxpose.xlu0.b32.cont [15/16] 0.0, 128
      %608 = vxpose.xlu0.b32.end [16/16] 0.0, 128
      %v609 = vpop.trf.xlu0
      %v610 = vpop.trf.xlu0
      %v611 = vpop.trf.xlu0
      %v612 = vpop.trf.xlu0
      %v613 = vpop.trf.xlu0
      %v614 = vpop.trf.xlu0
      %v615 = vpop.trf.xlu0
      %v616 = vpop.trf.xlu0
      %v617 = vpop.trf.xlu0
      %v618 = vpop.trf.xlu0
      %v619 = vpop.trf.xlu0
      %v620 = vpop.trf.xlu0
      %v621 = vpop.trf.xlu0
      %v622 = vpop.trf.xlu0
      %v623 = vpop.trf.xlu0
      %v624 = vpop.trf.xlu0
      %625 = vxpose.xlu0.b32.start [1/16] %v588, 128
      %626 = vxpose.xlu0.b32.cont [2/16] 0.0, 128
      %627 = vxpose.xlu0.b32.cont [3/16] 0.0, 128
      %628 = vxpose.xlu0.b32.cont [4/16] 0.0, 128
      %629 = vxpose.xlu0.b32.cont [5/16] 0.0, 128
      %630 = vxpose.xlu0.b32.cont [6/16] 0.0, 128
      %631 = vxpose.xlu0.b32.cont [7/16] 0.0, 128
      %632 = vxpose.xlu0.b32.cont [8/16] 0.0, 128
      %633 = vxpose.xlu0.b32.cont [9/16] 0.0, 128
      %634 = vxpose.xlu0.b32.cont [10/16] 0.0, 128
      %635 = vxpose.xlu0.b32.cont [11/16] 0.0, 128
      %636 = vxpose.xlu0.b32.cont [12/16] 0.0, 128
      %637 = vxpose.xlu0.b32.cont [13/16] 0.0, 128
      %638 = vxpose.xlu0.b32.cont [14/16] 0.0, 128
      %639 = vxpose.xlu0.b32.cont [15/16] 0.0, 128
      %640 = vxpose.xlu0.b32.end [16/16] 0.0, 128
      %v641 = vpop.trf.xlu0
      %v642 = vpop.trf.xlu0
      %v643 = vpop.trf.xlu0
      %v644 = vpop.trf.xlu0
      %v645 = vpop.trf.xlu0
      %v646 = vpop.trf.xlu0
      %v647 = vpop.trf.xlu0
      %v648 = vpop.trf.xlu0
      %v649 = vpop.trf.xlu0
      %v650 = vpop.trf.xlu0
      %v651 = vpop.trf.xlu0
      %v652 = vpop.trf.xlu0
      %v653 = vpop.trf.xlu0
      %v654 = vpop.trf.xlu0
      %v655 = vpop.trf.xlu0
      %v656 = vpop.trf.xlu0
      %657 = vxpose.xlu0.b32.start [1/16] %v590, 128
      %658 = vxpose.xlu0.b32.cont [2/16] 0.0, 128
      %659 = vxpose.xlu0.b32.cont [3/16] 0.0, 128
      %660 = vxpose.xlu0.b32.cont [4/16] 0.0, 128
      %661 = vxpose.xlu0.b32.cont [5/16] 0.0, 128
      %662 = vxpose.xlu0.b32.cont [6/16] 0.0, 128
      %663 = vxpose.xlu0.b32.cont [7/16] 0.0, 128
      %664 = vxpose.xlu0.b32.cont [8/16] 0.0, 128
      %665 = vxpose.xlu0.b32.cont [9/16] 0.0, 128
      %666 = vxpose.xlu0.b32.cont [10/16] 0.0, 128
      %667 = vxpose.xlu0.b32.cont [11/16] 0.0, 128
      %668 = vxpose.xlu0.b32.cont [12/16] 0.0, 128
      %669 = vxpose.xlu0.b32.cont [13/16] 0.0, 128
      %670 = vxpose.xlu0.b32.cont [14/16] 0.0, 128
      %671 = vxpose.xlu0.b32.cont [15/16] 0.0, 128
      %672 = vxpose.xlu0.b32.end [16/16] 0.0, 128
      %v673 = vpop.trf.xlu0
      %v674 = vpop.trf.xlu0
      %v675 = vpop.trf.xlu0
      %v676 = vpop.trf.xlu0
      %v677 = vpop.trf.xlu0
      %v678 = vpop.trf.xlu0
      %v679 = vpop.trf.xlu0
      %v680 = vpop.trf.xlu0
      %v681 = vpop.trf.xlu0
      %v682 = vpop.trf.xlu0
      %v683 = vpop.trf.xlu0
      %v684 = vpop.trf.xlu0
      %v685 = vpop.trf.xlu0
      %v686 = vpop.trf.xlu0
      %v687 = vpop.trf.xlu0
      %v688 = vpop.trf.xlu0
      %689 = vxpose.xlu0.b32.start [1/16] %v592, 128
      %690 = vxpose.xlu0.b32.cont [2/16] 0.0, 128
      %691 = vxpose.xlu0.b32.cont [3/16] 0.0, 128
      %692 = vxpose.xlu0.b32.cont [4/16] 0.0, 128
      %693 = vxpose.xlu0.b32.cont [5/16] 0.0, 128
      %694 = vxpose.xlu0.b32.cont [6/16] 0.0, 128
      %695 = vxpose.xlu0.b32.cont [7/16] 0.0, 128
      %696 = vxpose.xlu0.b32.cont [8/16] 0.0, 128
      %697 = vxpose.xlu0.b32.cont [9/16] 0.0, 128
      %698 = vxpose.xlu0.b32.cont [10/16] 0.0, 128
      %699 = vxpose.xlu0.b32.cont [11/16] 0.0, 128
      %700 = vxpose.xlu0.b32.cont [12/16] 0.0, 128
      %701 = vxpose.xlu0.b32.cont [13/16] 0.0, 128
      %702 = vxpose.xlu0.b32.cont [14/16] 0.0, 128
      %703 = vxpose.xlu0.b32.cont [15/16] 0.0, 128
      %704 = vxpose.xlu0.b32.end [16/16] 0.0, 128
      %v705 = vpop.trf.xlu0
      %v706 = vpop.trf.xlu0
      %v707 = vpop.trf.xlu0
      %v708 = vpop.trf.xlu0
      %v709 = vpop.trf.xlu0
      %v710 = vpop.trf.xlu0
      %v711 = vpop.trf.xlu0
      %v712 = vpop.trf.xlu0
      %v713 = vpop.trf.xlu0
      %v714 = vpop.trf.xlu0
      %v715 = vpop.trf.xlu0
      %v716 = vpop.trf.xlu0
      %v717 = vpop.trf.xlu0
      %v718 = vpop.trf.xlu0
      %v719 = vpop.trf.xlu0
      %v720 = vpop.trf.xlu0
      %s721 = scalar_lea.vmem %s154, 64
      %722 = vst.msk [vmem:[%s721] sm:$0xff] %vm288, %v609
      %723 = vst.msk [vmem:[%s721 + $0x8] sm:$0xff] %vm288, %v641
      %724 = vst.msk [vmem:[%s721 + $0x10] sm:$0xff] %vm288, %v673
      %725 = vst.msk [vmem:[%s721 + $0x18] sm:$0xff] %vm288, %v705
      %s726 = scalar_lea.vmem [#allocation2], 17
      %v727 = vld [vmem:[%s726] ss:$2 sm:$0xff]
      %s728 = scalar_lea.vmem [#allocation2], 49
      %v729 = vld [vmem:[%s728] ss:$2 sm:$0xff]
      %s730 = scalar_lea.vmem [#allocation2], 81
      %v731 = vld [vmem:[%s730] ss:$2 sm:$0xff]
      %s732 = scalar_lea.vmem [#allocation2], 113
      %v733 = vld [vmem:[%s732] ss:$2 sm:$0xff]
      %734 = vxpose.xlu0.b32.start [1/16] %v727, 128
      %735 = vxpose.xlu0.b32.cont [2/16] 0.0, 128
      %736 = vxpose.xlu0.b32.cont [3/16] 0.0, 128
      %737 = vxpose.xlu0.b32.cont [4/16] 0.0, 128
      %738 = vxpose.xlu0.b32.cont [5/16] 0.0, 128
      %739 = vxpose.xlu0.b32.cont [6/16] 0.0, 128
      %740 = vxpose.xlu0.b32.cont [7/16] 0.0, 128
      %741 = vxpose.xlu0.b32.cont [8/16] 0.0, 128
      %742 = vxpose.xlu0.b32.cont [9/16] 0.0, 128
      %743 = vxpose.xlu0.b32.cont [10/16] 0.0, 128
      %744 = vxpose.xlu0.b32.cont [11/16] 0.0, 128
      %745 = vxpose.xlu0.b32.cont [12/16] 0.0, 128
      %746 = vxpose.xlu0.b32.cont [13/16] 0.0, 128
      %747 = vxpose.xlu0.b32.cont [14/16] 0.0, 128
      %748 = vxpose.xlu0.b32.cont [15/16] 0.0, 128
      %749 = vxpose.xlu0.b32.end [16/16] 0.0, 128
      %v750 = vpop.trf.xlu0
      %v751 = vpop.trf.xlu0
      %v752 = vpop.trf.xlu0
      %v753 = vpop.trf.xlu0
      %v754 = vpop.trf.xlu0
      %v755 = vpop.trf.xlu0
      %v756 = vpop.trf.xlu0
      %v757 = vpop.trf.xlu0
      %v758 = vpop.trf.xlu0
      %v759 = vpop.trf.xlu0
      %v760 = vpop.trf.xlu0
      %v761 = vpop.trf.xlu0
      %v762 = vpop.trf.xlu0
      %v763 = vpop.trf.xlu0
      %v764 = vpop.trf.xlu0
      %v765 = vpop.trf.xlu0
      %766 = vxpose.xlu0.b32.start [1/16] %v729, 128
      %767 = vxpose.xlu0.b32.cont [2/16] 0.0, 128
      %768 = vxpose.xlu0.b32.cont [3/16] 0.0, 128
      %769 = vxpose.xlu0.b32.cont [4/16] 0.0, 128
      %770 = vxpose.xlu0.b32.cont [5/16] 0.0, 128
      %771 = vxpose.xlu0.b32.cont [6/16] 0.0, 128
      %772 = vxpose.xlu0.b32.cont [7/16] 0.0, 128
      %773 = vxpose.xlu0.b32.cont [8/16] 0.0, 128
      %774 = vxpose.xlu0.b32.cont [9/16] 0.0, 128
      %775 = vxpose.xlu0.b32.cont [10/16] 0.0, 128
      %776 = vxpose.xlu0.b32.cont [11/16] 0.0, 128
      %777 = vxpose.xlu0.b32.cont [12/16] 0.0, 128
      %778 = vxpose.xlu0.b32.cont [13/16] 0.0, 128
      %779 = vxpose.xlu0.b32.cont [14/16] 0.0, 128
      %780 = vxpose.xlu0.b32.cont [15/16] 0.0, 128
      %781 = vxpose.xlu0.b32.end [16/16] 0.0, 128
      %v782 = vpop.trf.xlu0
      %v783 = vpop.trf.xlu0
      %v784 = vpop.trf.xlu0
      %v785 = vpop.trf.xlu0
      %v786 = vpop.trf.xlu0
      %v787 = vpop.trf.xlu0
      %v788 = vpop.trf.xlu0
      %v789 = vpop.trf.xlu0
      %v790 = vpop.trf.xlu0
      %v791 = vpop.trf.xlu0
      %v792 = vpop.trf.xlu0
      %v793 = vpop.trf.xlu0
      %v794 = vpop.trf.xlu0
      %v795 = vpop.trf.xlu0
      %v796 = vpop.trf.xlu0
      %v797 = vpop.trf.xlu0
      %798 = vxpose.xlu0.b32.start [1/16] %v731, 128
      %799 = vxpose.xlu0.b32.cont [2/16] 0.0, 128
      %800 = vxpose.xlu0.b32.cont [3/16] 0.0, 128
      %801 = vxpose.xlu0.b32.cont [4/16] 0.0, 128
      %802 = vxpose.xlu0.b32.cont [5/16] 0.0, 128
      %803 = vxpose.xlu0.b32.cont [6/16] 0.0, 128
      %804 = vxpose.xlu0.b32.cont [7/16] 0.0, 128
      %805 = vxpose.xlu0.b32.cont [8/16] 0.0, 128
      %806 = vxpose.xlu0.b32.cont [9/16] 0.0, 128
      %807 = vxpose.xlu0.b32.cont [10/16] 0.0, 128
      %808 = vxpose.xlu0.b32.cont [11/16] 0.0, 128
      %809 = vxpose.xlu0.b32.cont [12/16] 0.0, 128
      %810 = vxpose.xlu0.b32.cont [13/16] 0.0, 128
      %811 = vxpose.xlu0.b32.cont [14/16] 0.0, 128
      %812 = vxpose.xlu0.b32.cont [15/16] 0.0, 128
      %813 = vxpose.xlu0.b32.end [16/16] 0.0, 128
      %v814 = vpop.trf.xlu0
      %v815 = vpop.trf.xlu0
      %v816 = vpop.trf.xlu0
      %v817 = vpop.trf.xlu0
      %v818 = vpop.trf.xlu0
      %v819 = vpop.trf.xlu0
      %v820 = vpop.trf.xlu0
      %v821 = vpop.trf.xlu0
      %v822 = vpop.trf.xlu0
      %v823 = vpop.trf.xlu0
      %v824 = vpop.trf.xlu0
      %v825 = vpop.trf.xlu0
      %v826 = vpop.trf.xlu0
      %v827 = vpop.trf.xlu0
      %v828 = vpop.trf.xlu0
      %v829 = vpop.trf.xlu0
      %830 = vxpose.xlu0.b32.start [1/16] %v733, 128
      %831 = vxpose.xlu0.b32.cont [2/16] 0.0, 128
      %832 = vxpose.xlu0.b32.cont [3/16] 0.0, 128
      %833 = vxpose.xlu0.b32.cont [4/16] 0.0, 128
      %834 = vxpose.xlu0.b32.cont [5/16] 0.0, 128
      %835 = vxpose.xlu0.b32.cont [6/16] 0.0, 128
      %836 = vxpose.xlu0.b32.cont [7/16] 0.0, 128
      %837 = vxpose.xlu0.b32.cont [8/16] 0.0, 128
      %838 = vxpose.xlu0.b32.cont [9/16] 0.0, 128
      %839 = vxpose.xlu0.b32.cont [10/16] 0.0, 128
      %840 = vxpose.xlu0.b32.cont [11/16] 0.0, 128
      %841 = vxpose.xlu0.b32.cont [12/16] 0.0, 128
      %842 = vxpose.xlu0.b32.cont [13/16] 0.0, 128
      %843 = vxpose.xlu0.b32.cont [14/16] 0.0, 128
      %844 = vxpose.xlu0.b32.cont [15/16] 0.0, 128
      %845 = vxpose.xlu0.b32.end [16/16] 0.0, 128
      %v846 = vpop.trf.xlu0
      %v847 = vpop.trf.xlu0
      %v848 = vpop.trf.xlu0
      %v849 = vpop.trf.xlu0
      %v850 = vpop.trf.xlu0
      %v851 = vpop.trf.xlu0
      %v852 = vpop.trf.xlu0
      %v853 = vpop.trf.xlu0
      %v854 = vpop.trf.xlu0
      %v855 = vpop.trf.xlu0
      %v856 = vpop.trf.xlu0
      %v857 = vpop.trf.xlu0
      %v858 = vpop.trf.xlu0
      %v859 = vpop.trf.xlu0
      %v860 = vpop.trf.xlu0
      %v861 = vpop.trf.xlu0
      %s862 = scalar_lea.vmem %s154, 96
      %863 = vst.msk [vmem:[%s862] sm:$0xff] %vm288, %v750
      %864 = vst.msk [vmem:[%s862 + $0x8] sm:$0xff] %vm288, %v782
      %865 = vst.msk [vmem:[%s862 + $0x10] sm:$0xff] %vm288, %v814
      %866 = vst.msk [vmem:[%s862 + $0x18] sm:$0xff] %vm288, %v846
      %s867 = smul.u32 4, %s17
      %p868 = scmp.lt.s32.totalorder %s16, 1
      %s869 = scalar_select %p868, %s16, 1
      %p870 = scmp.lt.s32.totalorder %s867, 3
      %s871 = scalar_select %p870, %s867, 3
      %s872 = smul.addr %s869, 16
      %s873 = sadd.s32 %s871, %s872
      %s874 = smul.addr %s873, 8
      %s875 = scalar_lea.vmem %s1, %s874
      // Predicated region
      $region25: #{_contract_impl.1} parent=23 // pred_check
        %p876 = pneg %p72
      $region26: #{_contract_impl.1} parent=23 // pred_check_branch
        %878 = sbr.rel (%p876) target = $region28
      $region27: #{_contract_impl.1} parent=23 // pred_region
        %s879 = smul.u32 4, %s17
      $region28: #{_contract_impl.1} parent=23 // pred_fallthru
        _
    $region24: #{_contract_impl.1} parent=5 // pred_fallthru
      _
    %p880 = scmp.le.s32.totalorder 2, %s7
    // Predicated region
    $region29: #{_contract_impl.1} parent=5 // pred_check
      %p881 = pneg %p880
    $region30: #{_contract_impl.1} parent=5 // pred_check_branch
      %883 = sbr.rel (%p881) target = $region32
    $region31: #{_contract_impl.1} parent=5 // pred_region
      %s884 = ssub.s32 %s7, 2
      // Predicated region
      $region33: #{_contract_impl.1} parent=31 // pred_check
        %p885 = pneg %p78
      $region34: #{_contract_impl.1} parent=31 // pred_check_branch
        %887 = sbr.rel (%p885) target = $region36
      $region35: #{_contract_impl.1} parent=31 // pred_region
        %s888 = smul.u32 4, %s19
        %p889 = scmp.lt.s32.totalorder %s18, 1
        %s890 = scalar_select %p889, %s18, 1
        %p891 = scmp.lt.s32.totalorder %s888, 3
        %s892 = scalar_select %p891, %s888, 3
        %s893 = smul.addr %s890, 16
        %s894 = sadd.s32 %s892, %s893
        %s895 = smul.addr %s894, 8
        %s896 = scalar_lea.vmem %s1, %s895
      $region36: #{_contract_impl.1} parent=31 // pred_fallthru
        _
    $region32: #{_contract_impl.1} parent=5 // pred_fallthru
      _
  $region6: #{_contract_impl.1} parent=0 // loop_footer
    %s11 = sadd.s32 1, %s7
  $region7: #{_contract_impl.1} parent=0 // loop_footer_branch
    %6 = sbr.rel target = $region3
  $region8: #{_contract_impl.1} parent=0 // loop_exit
    _

</llo_original>
